<compile_context>
chip_gen: v5e
topology: v5e:2x2
jax: 0.10.0
libtpu: 0.0.40
codegen_flags: <defaults>
</compile_context>

<pallas_src>
import functools
import math

import numpy as np
import jax
import jax.numpy as jnp
from jax import lax
from jax.experimental import pallas as pl
from jax.experimental.pallas import tpu as pltpu

# ---------------- model constants -------------------------------------------
N = [0, 5, 9, 6, 10, 6, 6, 9, 6, 5]
D_MODELS = [N[i] * 5 for i in range(1, 10)]          # [25,45,30,50,30,30,45,30,25]
NHEAD = 5
FF = 64
EPS = 1e-5
OUT_F = 10

DPH = 64                                             # per-layer lane half (>= max d, == FF)
GDP = 2 * DPH                                        # 128: one full lane tile, 2 layers packed
GROUPS = ((0, 1), (2, 3), (4, 5), (6, 7), (8,))      # layer pairs packed on the lane axis
NG = len(GROUPS)
LAYER_COL_OFF = np.concatenate([[0], np.cumsum(D_MODELS)])[:9]   # offsets into the 310 concat

# ---- packed parameter-slab layout (static row offsets, per group) ----------
R_WQ, R_WK, R_WV, R_WO = 0, GDP, 2 * GDP, 3 * GDP
R_W1, R_W2, R_WL, R_MAVG = 4 * GDP, 5 * GDP, 6 * GDP, 7 * GDP
R_VEC = 8 * GDP
(V_BQ, V_BK, V_BV, V_BO, V_B1, V_B2,
 V_LN1G, V_LN1B, V_LN2G, V_LN2B) = range(10)
GROUP_ROWS = 8 * GDP + 16                            # 1040 rows x 128 lanes per group
TOTAL_ROWS = NG * GROUP_ROWS                         # 5200


# -----------------------------------------------------------------------------
# Kernel: one grid step = one packed pair of encoder layers (all heads, both
# batches) + that pair's partial of the fused concat + Linear(310->10).
# -----------------------------------------------------------------------------
def group_kernel(x_ref, p_ref, hm_ref, aux_ref, out_ref, *, bs, ncol):
    f32 = jnp.float32
    dot = functools.partial(jnp.dot, preferred_element_type=f32)

    x = x_ref[...]                                   # (bs, 128): pair of layers on lanes
    hmask = hm_ref[...]                              # (ncol, 128): per-(layer,head) lane mask
    amask = aux_ref[0:bs, :]                         # (bs, ncol): 0 / -1e9 cross-batch mask
    dfix = aux_ref[bs:2 * bs, :]                     # (bs, ncol): +1 on dead segments
    bd = aux_ref[2 * bs:2 * bs + ncol, :]            # (ncol, ncol): block-diag ones (seg sums)
    vecs = p_ref[R_VEC:R_VEC + 16, :]                # (16, 128): all packed vectors, one load

    def wblk(r):                                     # (128, 128) weight block, static offset
        return p_ref[r:r + GDP, :]

    def vrow(r):                                     # (1, 128) packed vector row
        return vecs[r:r + 1, :]

    # --- self-attention: heads x layers x batch live on the lane axis of the
    #     replicated K/V stacks, so scores are ONE matmul and P@V directly
    #     yields the concatenated-heads output for both packed layers. ---------
    q = dot(x, wblk(R_WQ)) + vrow(V_BQ)              # 1/sqrt(hd) pre-folded into Wq/bq
    k = dot(x, wblk(R_WK)) + vrow(V_BK)
    v = dot(x, wblk(R_WV)) + vrow(V_BV)

    reps = ncol // bs                                # = 2 * NHEAD
    ks = jnp.concatenate([k] * reps, axis=0) * hmask            # (ncol, 128)
    vs = jnp.concatenate([v] * reps, axis=0) * hmask

    s = lax.dot_general(q, ks, (((1,), (1,)), ((), ())),
                        preferred_element_type=f32)             # (bs, ncol)
    s = s + amask                                               # kill cross-batch columns
    s = s - jnp.max(s, axis=-1, keepdims=True)                  # row-wide max: exact stabiliser
    p = jnp.exp(s)
    denom = dot(p, bd) + dfix                                   # per-(layer,head,batch) sums
    pn = p / denom                                              # exact reciprocal
    o = dot(pn, vs)                                             # (bs, 128): concat heads
    attn = dot(o, wblk(R_WO)) + vrow(V_BO)

    # --- post-LN residual blocks; per-layer mean/var via one MXU matmul each
    #     against a block-diagonal 1/d matrix (no cross-lane reductions). ------
    mavg = wblk(R_MAVG)

    def pair_ln(h, g_row, b_row):
        mu = dot(h, mavg)                                       # per-layer mean, lane-broadcast
        hc = h - mu
        var = dot(hc * hc, mavg)                                # per-layer biased variance
        return hc * lax.rsqrt(var + EPS) * vrow(g_row) + vrow(b_row)

    y1 = pair_ln(x + attn, V_LN1G, V_LN1B)
    h1 = jnp.maximum(dot(y1, wblk(R_W1)) + vrow(V_B1), 0.0)
    ff = dot(h1, wblk(R_W2)) + vrow(V_B2)
    z = pair_ln(y1 + ff, V_LN2G, V_LN2B)

    # --- this group's partial of the fused concat + Linear(310->10); the
    #     eval-mode BatchNorm scale is folded into WL host-side. ---------------
    out_ref[...] = dot(z, wblk(R_WL))


# -----------------------------------------------------------------------------
# Host / trace-time plumbing
# -----------------------------------------------------------------------------
def _build_masks(batch, seq):
    """Trace-time (numpy) construction of the attention bookkeeping tensors."""
    bs = batch * seq
    ncol = 2 * NHEAD * bs                              # score columns: (layer, head, b, pos)
    col = np.arange(ncol)
    col_b = (col % bs) // seq                          # batch of each score column
    row_b = np.repeat(np.arange(batch), seq)           # batch of each query row
    same = row_b[:, None] == col_b[None, :]
    amask = np.where(same, 0.0, -1e9).astype(np.float32)
    dfix = np.where(same, 0.0, 1.0).astype(np.float32)        # keeps dead denominators at 1
    seg = col // seq
    bd = (seg[:, None] == seg[None, :]).astype(np.float32)    # (ncol, ncol) block-diag ones
    aux = np.concatenate([amask, dfix, bd], axis=0)           # (2*bs + ncol, ncol)

    hmasks = []
    for layers in GROUPS:
        hm = np.zeros((ncol, GDP), np.float32)
        for slot, l in enumerate(layers):
            hd = D_MODELS[l] // NHEAD
            for h in range(NHEAD):
                rep = slot * NHEAD + h
                lo = slot * DPH + h * hd
                hm[rep * bs:(rep + 1) * bs, lo:lo + hd] = 1.0
        hmasks.append(hm)
    hmask_all = np.concatenate(hmasks, axis=0)                # (NG*ncol, GDP)
    return aux, hmask_all


def _pack_inputs(inputs):
    """9 x (B, S, N_i, 5) -> (NG*B*S, 128): layer pairs side-by-side on lanes."""
    b, s = inputs[0].shape[:2]
    bs = b * s
    flat = [jnp.reshape(x, (bs, -1)).astype(jnp.float32) for x in inputs]
    blocks = []
    for layers in GROUPS:
        halves = []
        for slot in range(2):
            if slot < len(layers):
                x2 = flat[layers[slot]]
                halves.append(jnp.pad(x2, ((0, 0), (0, DPH - x2.shape[1]))))
            else:
                halves.append(jnp.zeros((bs, DPH), jnp.float32))
        blocks.append(jnp.concatenate(halves, axis=1))
    return jnp.concatenate(blocks, axis=0)                    # (NG*bs, 128)


@jax.jit
def transformer_encoders2_forward(inputs, param_slab, out_shift):
    """inputs: list of 9 arrays (B, S, N[i], 5); returns (B, S, 10)."""
    b, s = inputs[0].shape[:2]
    bs = b * s
    ncol = 2 * NHEAD * bs
    x_all = _pack_inputs(inputs)
    aux_np, hmask_np = _build_masks(b, s)                     # trace-time constants
    aux = jnp.asarray(aux_np)
    hmask_all = jnp.asarray(hmask_np)

    kern = functools.partial(group_kernel, bs=bs, ncol=ncol)
    out = pl.pallas_call(
        kern,
        out_shape=jax.ShapeDtypeStruct((NG * bs, GDP), jnp.float32),
        grid=(NG,),
        in_specs=[
            pl.BlockSpec((bs, GDP), lambda g: (g, 0)),              # packed activations
            pl.BlockSpec((GROUP_ROWS, GDP), lambda g: (g, 0)),      # this group's params (pipelined)
            pl.BlockSpec((ncol, GDP), lambda g: (g, 0)),            # this group's head mask
            pl.BlockSpec((2 * bs + ncol, ncol), lambda g: (0, 0)),  # amask/dfix/BD (resident)
        ],
        out_specs=pl.BlockSpec((bs, GDP), lambda g: (g, 0)),
        compiler_params=pltpu.CompilerParams(
            dimension_semantics=("parallel",)),                     # v7x: groups over 2 TCs
    )(x_all, param_slab, hmask_all, aux)

    # Trivial XLA epilogue: sum per-group partials of the fused Linear, add the
    # folded bias + BatchNorm shift, slice the 10 valid lanes.
    y = jnp.sum(out.reshape(NG, bs, GDP), axis=0)[:, :OUT_F] + out_shift
    return jnp.reshape(y, (b, s, OUT_F))


# -----------------------------------------------------------------------------
# Deterministic parameter construction (synthetic, torch-oriented tensors)
# -----------------------------------------------------------------------------
def make_encoder_params(key, d):
    ks = jax.random.split(key, 12)
    s = 0.1
    p = {
        'wq': jax.random.normal(ks[0], (d, d), jnp.float32) * s,
        'wk': jax.random.normal(ks[1], (d, d), jnp.float32) * s,
        'wv': jax.random.normal(ks[2], (d, d), jnp.float32) * s,
        'bq': jax.random.normal(ks[3], (d,), jnp.float32) * 0.02,
        'bk': jax.random.normal(ks[4], (d,), jnp.float32) * 0.02,
        'bv': jax.random.normal(ks[5], (d,), jnp.float32) * 0.02,
        'wo': jax.random.normal(ks[6], (d, d), jnp.float32) * s,
        'bo': jax.random.normal(ks[7], (d,), jnp.float32) * 0.02,
        'w1': jax.random.normal(ks[8], (FF, d), jnp.float32) * s,     # Linear(d, 64).weight
        'b1': jax.random.normal(ks[9], (FF,), jnp.float32) * 0.02,
        'w2': jax.random.normal(ks[10], (d, FF), jnp.float32) * s,    # Linear(64, d).weight
        'b2': jax.random.normal(ks[11], (d,), jnp.float32) * 0.02,
        'ln1g': jnp.ones((d,), jnp.float32),
        'ln1b': jnp.zeros((d,), jnp.float32),
        'ln2g': jnp.ones((d,), jnp.float32),
        'ln2b': jnp.zeros((d,), jnp.float32),
    }
    return {k: np.asarray(v) for k, v in p.items()}


def make_liner_params(key):
    ks = jax.random.split(key, 6)
    p = {
        'w': jax.random.normal(ks[0], (OUT_F, 310), jnp.float32) * 0.05,
        'b': jax.random.normal(ks[1], (OUT_F,), jnp.float32) * 0.02,
        'gamma': 1.0 + 0.1 * jax.random.normal(ks[2], (OUT_F,), jnp.float32),
        'beta': 0.1 * jax.random.normal(ks[3], (OUT_F,), jnp.float32),
        'rmean': 0.1 * jax.random.normal(ks[4], (OUT_F,), jnp.float32),
        'rvar': 1.0 + 0.1 * jnp.abs(jax.random.normal(ks[5], (OUT_F,), jnp.float32)),
    }
    return {k: np.asarray(v) for k, v in p.items()}


def build_param_slab(enc_params, lin_params):
    """Pack all model parameters into one (TOTAL_ROWS, 128) f32 slab.

    Folds 1/sqrt(head_dim) into Wq/bq and the eval-mode BatchNorm scale into the
    per-layer blocks of the final Linear.  Returns (slab, out_shift) where
    out_shift = b_lin*bn_scale + bn_shift is added in the wrapper epilogue.
    """
    slab = np.zeros((TOTAL_ROWS, GDP), np.float32)
    w_lin = np.asarray(lin_params['w'], np.float64)                   # (10, 310)
    bn_scale = np.asarray(lin_params['gamma'], np.float64) / np.sqrt(
        np.asarray(lin_params['rvar'], np.float64) + EPS)
    bn_shift = (np.asarray(lin_params['beta'], np.float64)
                - np.asarray(lin_params['rmean'], np.float64) * bn_scale)
    out_shift = np.asarray(lin_params['b'], np.float64) * bn_scale + bn_shift

    for gi, layers in enumerate(GROUPS):
        gb = gi * GROUP_ROWS
        for slot, l in enumerate(layers):
            p = enc_params[l]
            d = D_MODELS[l]
            hd = d // NHEAD
            off = slot * DPH
            sc = 1.0 / math.sqrt(hd)
            slab[gb + R_WQ + off:gb + R_WQ + off + d, off:off + d] = p['wq'].T * sc
            slab[gb + R_WK + off:gb + R_WK + off + d, off:off + d] = p['wk'].T
            slab[gb + R_WV + off:gb + R_WV + off + d, off:off + d] = p['wv'].T
            slab[gb + R_WO + off:gb + R_WO + off + d, off:off + d] = p['wo'].T
            slab[gb + R_W1 + off:gb + R_W1 + off + d, off:off + FF] = p['w1'].T
            slab[gb + R_W2 + off:gb + R_W2 + off + FF, off:off + d] = p['w2'].T
            co = int(LAYER_COL_OFF[l])
            slab[gb + R_WL + off:gb + R_WL + off + d, :OUT_F] = \
                (w_lin[:, co:co + d] * bn_scale[:, None]).T            # BN scale folded
            slab[gb + R_MAVG + off:gb + R_MAVG + off + d, off:off + DPH] = 1.0 / d
            vr = gb + R_VEC
            slab[vr + V_BQ, off:off + d] = p['bq'] * sc
            slab[vr + V_BK, off:off + d] = p['bk']
            slab[vr + V_BV, off:off + d] = p['bv']
            slab[vr + V_BO, off:off + d] = p['bo']
            slab[vr + V_B1, off:off + FF] = p['b1']
            slab[vr + V_B2, off:off + d] = p['b2']
            slab[vr + V_LN1G, off:off + d] = p['ln1g']
            slab[vr + V_LN1B, off:off + d] = p['ln1b']
            slab[vr + V_LN2G, off:off + d] = p['ln2g']
            slab[vr + V_LN2B, off:off + d] = p['ln2b']
    return jnp.asarray(slab), jnp.asarray(out_shift.astype(np.float32))


# -----------------------------------------------------------------------------
# Exact float64 numpy reference (host) for the self-check
# -----------------------------------------------------------------------------
def _encoder_ref_np(x, p):
    b, s, d = x.shape
    hd = d // NHEAD
    P = {k: np.asarray(v, np.float64) for k, v in p.items()}
    q = x @ P['wq'].T + P['bq']
    k = x @ P['wk'].T + P['bk']
    v = x @ P['wv'].T + P['bv']

    def split(t):
        return t.reshape(b, s, NHEAD, hd).transpose(0, 2, 1, 3)

    qh, kh, vh = split(q), split(k), split(v)
    sc = qh @ kh.transpose(0, 1, 3, 2) / math.sqrt(hd)
    sc = sc - sc.max(axis=-1, keepdims=True)
    pr = np.exp(sc)
    pr = pr / pr.sum(axis=-1, keepdims=True)
    o = (pr @ vh).transpose(0, 2, 1, 3).reshape(b, s, d)
    attn = o @ P['wo'].T + P['bo']

    def ln(z, g, bb):
        mu = z.mean(-1, keepdims=True)
        var = ((z - mu) ** 2).mean(-1, keepdims=True)
        return (z - mu) / np.sqrt(var + EPS) * g + bb

    y = ln(x + attn, P['ln1g'], P['ln1b'])
    h1 = np.maximum(y @ P['w1'].T + P['b1'], 0.0)
    ff = h1 @ P['w2'].T + P['b2']
    return ln(y + ff, P['ln2g'], P['ln2b'])


def _forward_ref_np(inputs, enc_params, lin_params):
    outs = []
    for x, p in zip(inputs, enc_params):
        b, s = x.shape[:2]
        xr = np.asarray(x, np.float64).reshape(b, s, -1)
        outs.append(_encoder_ref_np(xr, p))
    x_all = np.concatenate(outs, axis=2)                       # (b, s, 310)
    L = {k: np.asarray(v, np.float64) for k, v in lin_params.items()}
    y = x_all @ L['w'].T + L['b']
    scale = L['gamma'] / np.sqrt(L['rvar'] + EPS)
    shift = L['beta'] - L['rmean'] * scale
    return y * scale + shift


# -----------------------------------------------------------------------------
if __name__ == "__main__":
    key = jax.random.PRNGKey(0)
    B, S = 2, 8

    k_in, k_enc, k_lin = jax.random.split(key, 3)

    # inputs: (B, S, N[i], 5), matching the PyTorch forward signature
    in_keys = jax.random.split(k_in, 9)
    inputs = [jax.random.normal(in_keys[j], (B, S, N[j + 1], 5), jnp.float32)
              for j in range(9)]

    enc_params = [make_encoder_params(jax.random.fold_in(k_enc, j), d)
                  for j, d in enumerate(D_MODELS)]
    lin_params = make_liner_params(k_lin)
    param_slab, out_shift = build_param_slab(enc_params, lin_params)

    out = transformer_encoders2_forward(inputs, param_slab, out_shift)
    out = jax.block_until_ready(out)
    assert out.shape == (B, S, OUT_F), out.shape
    assert bool(jnp.all(jnp.isfinite(out)))

    # Tolerance tightened 5x vs the previous version (exact softmax reciprocal);
    # remaining error is ordinary f32 MXU / transcendental rounding.
    ref = _forward_ref_np(inputs, enc_params, lin_params)
    np.testing.assert_allclose(np.asarray(out), ref, rtol=1e-3, atol=1e-3)

    print("KERNEL_OK")
</pallas_src>

<mosaic_0001>
module attributes {stable_mosaic.version = 11 : i64} {
  func.func @group_kernel(%arg0: i32, %arg1: memref<16x128xf32, #tpu.memory_space<vmem>>, %arg2: memref<1040x128xf32, #tpu.memory_space<vmem>>, %arg3: memref<160x128xf32, #tpu.memory_space<vmem>>, %arg4: memref<192x160xf32, #tpu.memory_space<vmem>>, %arg5: memref<16x128xf32, #tpu.memory_space<vmem>>) attributes {dimension_semantics = [#tpu.dimension_semantics<parallel>], iteration_bounds = array<i64: 5>, scalar_prefetch = 0 : i64, scratch_operands = 0 : i64, tpu.core_type = #tpu.core_type<tc>, window_params = [{transform_indices = @transform_0, window_bounds = array<i64: 16, 128>}, {transform_indices = @transform_1, window_bounds = array<i64: 1040, 128>}, {transform_indices = @transform_2, window_bounds = array<i64: 160, 128>}, {pipeline_mode = #tpu.pipeline_mode<synchronous>, transform_indices = @transform_3, window_bounds = array<i64: 192, 160>}, {transform_indices = @transform_4, window_bounds = array<i64: 16, 128>}]} {
    %c0 = arith.constant 0 : index
    %c0_0 = arith.constant 0 : index
    %0 = vector.load %arg1[%c0, %c0_0] : memref<16x128xf32, #tpu.memory_space<vmem>>, vector<16x128xf32>
    %c0_1 = arith.constant 0 : index
    %c0_2 = arith.constant 0 : index
    %1 = vector.load %arg3[%c0_1, %c0_2] : memref<160x128xf32, #tpu.memory_space<vmem>>, vector<160x128xf32>
    %c0_3 = arith.constant 0 : index
    %c0_4 = arith.constant 0 : index
    %2 = vector.load %arg4[%c0_3, %c0_4] : memref<192x160xf32, #tpu.memory_space<vmem>>, vector<16x160xf32>
    %c16 = arith.constant 16 : index
    %c0_5 = arith.constant 0 : index
    %3 = vector.load %arg4[%c16, %c0_5] : memref<192x160xf32, #tpu.memory_space<vmem>>, vector<16x160xf32>
    %c32 = arith.constant 32 : index
    %c0_6 = arith.constant 0 : index
    %4 = vector.load %arg4[%c32, %c0_6] : memref<192x160xf32, #tpu.memory_space<vmem>>, vector<160x160xf32>
    %c1024 = arith.constant 1024 : index
    %c0_7 = arith.constant 0 : index
    %5 = vector.load %arg2[%c1024, %c0_7] : memref<1040x128xf32, #tpu.memory_space<vmem>>, vector<16x128xf32>
    %c0_8 = arith.constant 0 : index
    %c0_9 = arith.constant 0 : index
    %6 = vector.load %arg2[%c0_8, %c0_9] : memref<1040x128xf32, #tpu.memory_space<vmem>>, vector<128x128xf32>
    %cst = arith.constant dense<0.000000e+00> : vector<16x128xf32>
    %7 = tpu.matmul %0, %6, %cst {dimension_numbers = #tpu.dot_dimension_numbers<[1], [0], [0], [1], [0, 0, 1, 1], [], []>} : vector<16x128xf32>, vector<128x128xf32>, vector<16x128xf32> -> vector<16x128xf32>
    %8 = vector.extract_strided_slice %5 {offsets = [0, 0], sizes = [1, 128], strides = [1, 1]} : vector<16x128xf32> to vector<1x128xf32>
    %9 = vector.broadcast %8 : vector<1x128xf32> to vector<16x128xf32>
    %10 = arith.addf %7, %9 : vector<16x128xf32>
    %c128 = arith.constant 128 : index
    %c0_10 = arith.constant 0 : index
    %11 = vector.load %arg2[%c128, %c0_10] : memref<1040x128xf32, #tpu.memory_space<vmem>>, vector<128x128xf32>
    %cst_11 = arith.constant dense<0.000000e+00> : vector<16x128xf32>
    %12 = tpu.matmul %0, %11, %cst_11 {dimension_numbers = #tpu.dot_dimension_numbers<[1], [0], [0], [1], [0, 0, 1, 1], [], []>} : vector<16x128xf32>, vector<128x128xf32>, vector<16x128xf32> -> vector<16x128xf32>
    %13 = vector.extract_strided_slice %5 {offsets = [1, 0], sizes = [1, 128], strides = [1, 1]} : vector<16x128xf32> to vector<1x128xf32>
    %14 = vector.broadcast %13 : vector<1x128xf32> to vector<16x128xf32>
    %15 = arith.addf %12, %14 : vector<16x128xf32>
    %c256 = arith.constant 256 : index
    %c0_12 = arith.constant 0 : index
    %16 = vector.load %arg2[%c256, %c0_12] : memref<1040x128xf32, #tpu.memory_space<vmem>>, vector<128x128xf32>
    %cst_13 = arith.constant dense<0.000000e+00> : vector<16x128xf32>
    %17 = tpu.matmul %0, %16, %cst_13 {dimension_numbers = #tpu.dot_dimension_numbers<[1], [0], [0], [1], [0, 0, 1, 1], [], []>} : vector<16x128xf32>, vector<128x128xf32>, vector<16x128xf32> -> vector<16x128xf32>
    %18 = vector.extract_strided_slice %5 {offsets = [2, 0], sizes = [1, 128], strides = [1, 1]} : vector<16x128xf32> to vector<1x128xf32>
    %19 = vector.broadcast %18 : vector<1x128xf32> to vector<16x128xf32>
    %20 = arith.addf %17, %19 : vector<16x128xf32>
    %21 = tpu.concatenate %15, %15, %15, %15, %15, %15, %15, %15, %15, %15 in 0 : vector<16x128xf32>, vector<16x128xf32>, vector<16x128xf32>, vector<16x128xf32>, vector<16x128xf32>, vector<16x128xf32>, vector<16x128xf32>, vector<16x128xf32>, vector<16x128xf32>, vector<16x128xf32> -> vector<160x128xf32>
    %22 = arith.mulf %21, %1 : vector<160x128xf32>
    %23 = tpu.concatenate %20, %20, %20, %20, %20, %20, %20, %20, %20, %20 in 0 : vector<16x128xf32>, vector<16x128xf32>, vector<16x128xf32>, vector<16x128xf32>, vector<16x128xf32>, vector<16x128xf32>, vector<16x128xf32>, vector<16x128xf32>, vector<16x128xf32>, vector<16x128xf32> -> vector<160x128xf32>
    %24 = arith.mulf %23, %1 : vector<160x128xf32>
    %cst_14 = arith.constant dense<0.000000e+00> : vector<16x160xf32>
    %25 = tpu.matmul %10, %22, %cst_14 {dimension_numbers = #tpu.dot_dimension_numbers<[1], [1], [0], [0], [0, 0, 1, 0], [], []>} : vector<16x128xf32>, vector<160x128xf32>, vector<16x160xf32> -> vector<16x160xf32>
    %26 = arith.addf %25, %2 : vector<16x160xf32>
    %cst_15 = arith.constant dense<0xFF800000> : vector<16xf32>
    %27 = vector.multi_reduction <maximumf>, %26, %cst_15 [1] : vector<16x160xf32> to vector<16xf32>
    %28 = vector.shape_cast %27 : vector<16xf32> to vector<16x1xf32>
    %29 = vector.broadcast %28 : vector<16x1xf32> to vector<16x160xf32>
    %30 = arith.subf %26, %29 : vector<16x160xf32>
    %31 = math.exp %30 : vector<16x160xf32>
    %cst_16 = arith.constant dense<0.000000e+00> : vector<16x160xf32>
    %32 = tpu.matmul %31, %4, %cst_16 {dimension_numbers = #tpu.dot_dimension_numbers<[1], [0], [0], [1], [0, 0, 1, 1], [], []>} : vector<16x160xf32>, vector<160x160xf32>, vector<16x160xf32> -> vector<16x160xf32>
    %33 = arith.addf %32, %3 : vector<16x160xf32>
    %34 = arith.divf %31, %33 : vector<16x160xf32>
    %cst_17 = arith.constant dense<0.000000e+00> : vector<16x128xf32>
    %35 = tpu.matmul %34, %24, %cst_17 {dimension_numbers = #tpu.dot_dimension_numbers<[1], [0], [0], [1], [0, 0, 1, 1], [], []>} : vector<16x160xf32>, vector<160x128xf32>, vector<16x128xf32> -> vector<16x128xf32>
    %c384 = arith.constant 384 : index
    %c0_18 = arith.constant 0 : index
    %36 = vector.load %arg2[%c384, %c0_18] : memref<1040x128xf32, #tpu.memory_space<vmem>>, vector<128x128xf32>
    %cst_19 = arith.constant dense<0.000000e+00> : vector<16x128xf32>
    %37 = tpu.matmul %35, %36, %cst_19 {dimension_numbers = #tpu.dot_dimension_numbers<[1], [0], [0], [1], [0, 0, 1, 1], [], []>} : vector<16x128xf32>, vector<128x128xf32>, vector<16x128xf32> -> vector<16x128xf32>
    %38 = vector.extract_strided_slice %5 {offsets = [3, 0], sizes = [1, 128], strides = [1, 1]} : vector<16x128xf32> to vector<1x128xf32>
    %39 = vector.broadcast %38 : vector<1x128xf32> to vector<16x128xf32>
    %40 = arith.addf %37, %39 : vector<16x128xf32>
    %c896 = arith.constant 896 : index
    %c0_20 = arith.constant 0 : index
    %41 = vector.load %arg2[%c896, %c0_20] : memref<1040x128xf32, #tpu.memory_space<vmem>>, vector<128x128xf32>
    %42 = arith.addf %0, %40 : vector<16x128xf32>
    %cst_21 = arith.constant dense<0.000000e+00> : vector<16x128xf32>
    %43 = tpu.matmul %42, %41, %cst_21 {dimension_numbers = #tpu.dot_dimension_numbers<[1], [0], [0], [1], [0, 0, 1, 1], [], []>} : vector<16x128xf32>, vector<128x128xf32>, vector<16x128xf32> -> vector<16x128xf32>
    %44 = arith.subf %42, %43 : vector<16x128xf32>
    %45 = arith.mulf %44, %44 : vector<16x128xf32>
    %cst_22 = arith.constant dense<0.000000e+00> : vector<16x128xf32>
    %46 = tpu.matmul %45, %41, %cst_22 {dimension_numbers = #tpu.dot_dimension_numbers<[1], [0], [0], [1], [0, 0, 1, 1], [], []>} : vector<16x128xf32>, vector<128x128xf32>, vector<16x128xf32> -> vector<16x128xf32>
    %cst_23 = arith.constant 9.99999974E-6 : f32
    %47 = vector.broadcast %cst_23 : f32 to vector<16x128xf32>
    %48 = arith.addf %46, %47 : vector<16x128xf32>
    %49 = math.rsqrt %48 : vector<16x128xf32>
    %50 = arith.mulf %44, %49 : vector<16x128xf32>
    %51 = vector.extract_strided_slice %5 {offsets = [6, 0], sizes = [1, 128], strides = [1, 1]} : vector<16x128xf32> to vector<1x128xf32>
    %52 = vector.broadcast %51 : vector<1x128xf32> to vector<16x128xf32>
    %53 = arith.mulf %50, %52 : vector<16x128xf32>
    %54 = vector.extract_strided_slice %5 {offsets = [7, 0], sizes = [1, 128], strides = [1, 1]} : vector<16x128xf32> to vector<1x128xf32>
    %55 = vector.broadcast %54 : vector<1x128xf32> to vector<16x128xf32>
    %56 = arith.addf %53, %55 : vector<16x128xf32>
    %c512 = arith.constant 512 : index
    %c0_24 = arith.constant 0 : index
    %57 = vector.load %arg2[%c512, %c0_24] : memref<1040x128xf32, #tpu.memory_space<vmem>>, vector<128x128xf32>
    %cst_25 = arith.constant dense<0.000000e+00> : vector<16x128xf32>
    %58 = tpu.matmul %56, %57, %cst_25 {dimension_numbers = #tpu.dot_dimension_numbers<[1], [0], [0], [1], [0, 0, 1, 1], [], []>} : vector<16x128xf32>, vector<128x128xf32>, vector<16x128xf32> -> vector<16x128xf32>
    %59 = vector.extract_strided_slice %5 {offsets = [4, 0], sizes = [1, 128], strides = [1, 1]} : vector<16x128xf32> to vector<1x128xf32>
    %60 = vector.broadcast %59 : vector<1x128xf32> to vector<16x128xf32>
    %61 = arith.addf %58, %60 : vector<16x128xf32>
    %cst_26 = arith.constant 0.000000e+00 : f32
    %62 = vector.broadcast %cst_26 : f32 to vector<16x128xf32>
    %63 = arith.maximumf %61, %62 : vector<16x128xf32>
    %c640 = arith.constant 640 : index
    %c0_27 = arith.constant 0 : index
    %64 = vector.load %arg2[%c640, %c0_27] : memref<1040x128xf32, #tpu.memory_space<vmem>>, vector<128x128xf32>
    %cst_28 = arith.constant dense<0.000000e+00> : vector<16x128xf32>
    %65 = tpu.matmul %63, %64, %cst_28 {dimension_numbers = #tpu.dot_dimension_numbers<[1], [0], [0], [1], [0, 0, 1, 1], [], []>} : vector<16x128xf32>, vector<128x128xf32>, vector<16x128xf32> -> vector<16x128xf32>
    %66 = vector.extract_strided_slice %5 {offsets = [5, 0], sizes = [1, 128], strides = [1, 1]} : vector<16x128xf32> to vector<1x128xf32>
    %67 = vector.broadcast %66 : vector<1x128xf32> to vector<16x128xf32>
    %68 = arith.addf %65, %67 : vector<16x128xf32>
    %69 = arith.addf %56, %68 : vector<16x128xf32>
    %cst_29 = arith.constant dense<0.000000e+00> : vector<16x128xf32>
    %70 = tpu.matmul %69, %41, %cst_29 {dimension_numbers = #tpu.dot_dimension_numbers<[1], [0], [0], [1], [0, 0, 1, 1], [], []>} : vector<16x128xf32>, vector<128x128xf32>, vector<16x128xf32> -> vector<16x128xf32>
    %71 = arith.subf %69, %70 : vector<16x128xf32>
    %72 = arith.mulf %71, %71 : vector<16x128xf32>
    %cst_30 = arith.constant dense<0.000000e+00> : vector<16x128xf32>
    %73 = tpu.matmul %72, %41, %cst_30 {dimension_numbers = #tpu.dot_dimension_numbers<[1], [0], [0], [1], [0, 0, 1, 1], [], []>} : vector<16x128xf32>, vector<128x128xf32>, vector<16x128xf32> -> vector<16x128xf32>
    %cst_31 = arith.constant 9.99999974E-6 : f32
    %74 = vector.broadcast %cst_31 : f32 to vector<16x128xf32>
    %75 = arith.addf %73, %74 : vector<16x128xf32>
    %76 = math.rsqrt %75 : vector<16x128xf32>
    %77 = arith.mulf %71, %76 : vector<16x128xf32>
    %78 = vector.extract_strided_slice %5 {offsets = [8, 0], sizes = [1, 128], strides = [1, 1]} : vector<16x128xf32> to vector<1x128xf32>
    %79 = vector.broadcast %78 : vector<1x128xf32> to vector<16x128xf32>
    %80 = arith.mulf %77, %79 : vector<16x128xf32>
    %81 = vector.extract_strided_slice %5 {offsets = [9, 0], sizes = [1, 128], strides = [1, 1]} : vector<16x128xf32> to vector<1x128xf32>
    %82 = vector.broadcast %81 : vector<1x128xf32> to vector<16x128xf32>
    %83 = arith.addf %80, %82 : vector<16x128xf32>
    %c768 = arith.constant 768 : index
    %c0_32 = arith.constant 0 : index
    %84 = vector.load %arg2[%c768, %c0_32] : memref<1040x128xf32, #tpu.memory_space<vmem>>, vector<128x128xf32>
    %cst_33 = arith.constant dense<0.000000e+00> : vector<16x128xf32>
    %85 = tpu.matmul %83, %84, %cst_33 {dimension_numbers = #tpu.dot_dimension_numbers<[1], [0], [0], [1], [0, 0, 1, 1], [], []>} : vector<16x128xf32>, vector<128x128xf32>, vector<16x128xf32> -> vector<16x128xf32>
    %c0_34 = arith.constant 0 : index
    %c0_35 = arith.constant 0 : index
    %86 = vector.load %arg5[%c0_34, %c0_35] : memref<16x128xf32, #tpu.memory_space<vmem>>, vector<16x128xf32>
    tpu.vector_store %arg5[%c0_34, %c0_35], %85 {strides = array<i32>} : memref<16x128xf32, #tpu.memory_space<vmem>>, vector<16x128xf32>,
    return
  }
  func.func @transform_0(%arg0: i32) -> (i32, i32) {
    %c0_i32 = arith.constant 0 : i32
    %c0_i32_0 = arith.constant 0 : i32
    return %arg0, %c0_i32 : i32, i32
  }
  func.func @transform_1(%arg0: i32) -> (i32, i32) {
    %c0_i32 = arith.constant 0 : i32
    %c0_i32_0 = arith.constant 0 : i32
    return %arg0, %c0_i32 : i32, i32
  }
  func.func @transform_2(%arg0: i32) -> (i32, i32) {
    %c0_i32 = arith.constant 0 : i32
    %c0_i32_0 = arith.constant 0 : i32
    return %arg0, %c0_i32 : i32, i32
  }
  func.func @transform_3(%arg0: i32) -> (i32, i32) {
    %c0_i32 = arith.constant 0 : i32
    %c0_i32_0 = arith.constant 0 : i32
    %c0_i32_1 = arith.constant 0 : i32
    return %c0_i32, %c0_i32_0 : i32, i32
  }
  func.func @transform_4(%arg0: i32) -> (i32, i32) {
    %c0_i32 = arith.constant 0 : i32
    %c0_i32_0 = arith.constant 0 : i32
    return %arg0, %c0_i32 : i32, i32
  }
}

</mosaic_0001>

<llo_original>
// kernel: transformer_encoders2_forward.1
$region0: #{transformer_encoders2_forward.1}
  #allocation0 [shape = 'u32[]', space=smem, size = 0x4, offset = 0x4, fixed_abs, tag = 'smem constant byte address 0x4 - core index']
  #allocation1 [shape = 'u32[72,128]{1,0:T(1,128)}', space=vmem, size = 0x9000, scoped, tag = 'internal scratch']
  %s0 = inlined_call_operand.vmem [shape: f32[80,128], index: 0, kind: input, shape index: {}]
  %s1 = inlined_call_operand.hbm [shape: f32[5200,128], index: 1, kind: input, shape index: {}]
  %s2 = inlined_call_operand.hbm [shape: f32[800,128], index: 2, kind: input, shape index: {}]
  %s3 = inlined_call_operand.hbm [shape: f32[192,160], index: 3, kind: input, shape index: {}]
  %s4 = inlined_call_operand.vmem [shape: f32[80,128], index: 4, kind: output, shape index: {}]
  %s5 = sld [smem:[#allocation0]]
  $region61: #{transformer_encoders2_forward.1} parent=0
    _
  %s7 = ssub.s32 1, %s5
  %s8 = scalar_select 0, %s7, %s5
  $region1: #{transformer_encoders2_forward.1} parent=0
    #allocation2 [shape = 'u8[1064960]{0}', space=vmem, size = 0x104000, scoped, tag = 'input window, operand 1']
    #allocation3 [shape = 's32[2]{0}', space=sflag, size = 0x8, scoped, tag = 'scoped memory for transformer_encoders2_forward.1']
    #allocation4 [shape = 'u8[163840]{0}', space=vmem, size = 0x28000, scoped, tag = 'input window, operand 2']
    #allocation5 [shape = 's32[2]{0}', space=sflag, size = 0x8, scoped, tag = 'scoped memory for transformer_encoders2_forward.1']
    #allocation6 [shape = 'u8[196608]{0}', space=vmem, size = 0x30000, scoped, tag = 'input window, operand 3, single buffered']
    %9 = vsyncpa [#allocation3], 0
    %s10 = scalar_lea.sflag [#allocation3], 1
    %11 = vsyncpa %s10, 0
    %12 = vsyncpa [#allocation5], 0
    %s13 = scalar_lea.sflag [#allocation5], 1
    %14 = vsyncpa %s13, 0
    loop: start=0, step=1, limit=7
    $region2: #{transformer_encoders2_forward.1} parent=1 // loop_pre_header
      _
    $region3: #{transformer_encoders2_forward.1} parent=1 // loop_header
      %s16 = sphi 0, %s20
      %p17 = scmp.ge.s32.totalorder %s16, 7
      %s26 = sphi 0, %s28
      %s29 = sphi 0, %s26
      %s30 = sphi 0, %s29
      %s46 = sphi 0, %s30
      %s52 = sphi 0, %s54
      %s55 = sphi 0, %s52
      %s56 = sphi 0, %s55
      %s72 = sphi 0, %s56
      %s78 = sphi 0, %s80
      %s81 = sphi 0, %s78
      %s82 = sphi 0, %s81
      %s98 = sphi 0, %s82
      %s102 = sphi 0, %s102
      %s104 = sphi 0, %s102
      %s105 = sphi 0, %s104
      %s119 = sphi 0, %s105
      %s125 = sphi 0, %s127
      %s128 = sphi 0, %s125
      %s129 = sphi 0, %s128
      %s145 = sphi 0, %s129
    $region4: #{transformer_encoders2_forward.1} parent=1 // loop_header_branch
      %19 = sbr.rel (%p17) target = $region8
    $region5: #{transformer_encoders2_forward.1} parent=1 // loop_body
      %s21 = ssub.s32 %s16, 1
      %s22 = ssub.s32 %s16, 2
      %s23 = sadd.s32 %s16, 1
      %s24 = ssub.s32 %s16, %s23
      %p25 = scmp.eq.s32.totalorder %s24, 0
      %s27 = sadd.s32 %s26, 1
      %s28 = scalar_select %p25, %s26, %s27
      %p31 = pneg %p25
      %p32 = scmp.eq.s32.totalorder %s16, 4
      %p33 = por %p31, %p32
      %p34 = scmp.ne.s32.totalorder %s26, %s29
      %p35 = scmp.eq.s32.totalorder %s16, 0
      %p36 = por %p34, %p35
      %p37 = scmp.ne.s32.totalorder %s26, %s29
      %p38 = scmp.eq.s32.totalorder %s21, 4
      %p39 = por %p37, %p38
      %p40 = scmp.ne.s32.totalorder %s29, %s30
      %p41 = scmp.eq.s32.totalorder %s21, 0
      %p42 = por %p40, %p41
      %p43 = scmp.ne.s32.totalorder %s29, %s30
      %p44 = scmp.eq.s32.totalorder %s22, 4
      %p45 = por %p43, %p44
      %p47 = scmp.ne.s32.totalorder %s30, %s46
      %p48 = scmp.eq.s32.totalorder %s22, 0
      %p49 = por %p47, %p48
      %s50 = ssub.s32 %s16, %s23
      %p51 = scmp.eq.s32.totalorder %s50, 0
      %s53 = sadd.s32 %s52, 1
      %s54 = scalar_select %p51, %s52, %s53
      %p57 = pneg %p51
      %p58 = scmp.eq.s32.totalorder %s16, 4
      %p59 = por %p57, %p58
      %p60 = scmp.ne.s32.totalorder %s52, %s55
      %p61 = scmp.eq.s32.totalorder %s16, 0
      %p62 = por %p60, %p61
      %p63 = scmp.ne.s32.totalorder %s52, %s55
      %p64 = scmp.eq.s32.totalorder %s21, 4
      %p65 = por %p63, %p64
      %p66 = scmp.ne.s32.totalorder %s55, %s56
      %p67 = scmp.eq.s32.totalorder %s21, 0
      %p68 = por %p66, %p67
      %p69 = scmp.ne.s32.totalorder %s55, %s56
      %p70 = scmp.eq.s32.totalorder %s22, 4
      %p71 = por %p69, %p70
      %p73 = scmp.ne.s32.totalorder %s56, %s72
      %p74 = scmp.eq.s32.totalorder %s22, 0
      %p75 = por %p73, %p74
      %s76 = ssub.s32 %s16, %s23
      %p77 = scmp.eq.s32.totalorder %s76, 0
      %s79 = sadd.s32 %s78, 1
      %s80 = scalar_select %p77, %s78, %s79
      %p83 = pneg %p77
      %p84 = scmp.eq.s32.totalorder %s16, 4
      %p85 = por %p83, %p84
      %p86 = scmp.ne.s32.totalorder %s78, %s81
      %p87 = scmp.eq.s32.totalorder %s16, 0
      %p88 = por %p86, %p87
      %p89 = scmp.ne.s32.totalorder %s78, %s81
      %p90 = scmp.eq.s32.totalorder %s21, 4
      %p91 = por %p89, %p90
      %p92 = scmp.ne.s32.totalorder %s81, %s82
      %p93 = scmp.eq.s32.totalorder %s21, 0
      %p94 = por %p92, %p93
      %p95 = scmp.ne.s32.totalorder %s81, %s82
      %p96 = scmp.eq.s32.totalorder %s22, 4
      %p97 = por %p95, %p96
      %p99 = scmp.ne.s32.totalorder %s82, %s98
      %p100 = scmp.eq.s32.totalorder %s22, 0
      %p101 = por %p99, %p100
      %s103 = sadd.s32 %s102, 1
      %p106 = scmp.eq.s32.totalorder %s16, 4
      %p107 = scmp.ne.s32.totalorder %s102, %s104
      %p108 = scmp.eq.s32.totalorder %s16, 0
      %p109 = por %p107, %p108
      %p110 = scmp.ne.s32.totalorder %s102, %s104
      %p111 = scmp.eq.s32.totalorder %s21, 4
      %p112 = por %p110, %p111
      %p113 = scmp.ne.s32.totalorder %s104, %s105
      %p114 = scmp.eq.s32.totalorder %s21, 0
      %p115 = por %p113, %p114
      %p116 = scmp.ne.s32.totalorder %s104, %s105
      %p117 = scmp.eq.s32.totalorder %s22, 4
      %p118 = por %p116, %p117
      %p120 = scmp.ne.s32.totalorder %s105, %s119
      %p121 = scmp.eq.s32.totalorder %s22, 0
      %p122 = por %p120, %p121
      %s123 = ssub.s32 %s16, %s23
      %p124 = scmp.eq.s32.totalorder %s123, 0
      %s126 = sadd.s32 %s125, 1
      %s127 = scalar_select %p124, %s125, %s126
      %p130 = pneg %p124
      %p131 = scmp.eq.s32.totalorder %s16, 4
      %p132 = por %p130, %p131
      %p133 = scmp.ne.s32.totalorder %s125, %s128
      %p134 = scmp.eq.s32.totalorder %s16, 0
      %p135 = por %p133, %p134
      %p136 = scmp.ne.s32.totalorder %s125, %s128
      %p137 = scmp.eq.s32.totalorder %s21, 4
      %p138 = por %p136, %p137
      %p139 = scmp.ne.s32.totalorder %s128, %s129
      %p140 = scmp.eq.s32.totalorder %s21, 0
      %p141 = por %p139, %p140
      %p142 = scmp.ne.s32.totalorder %s128, %s129
      %p143 = scmp.eq.s32.totalorder %s22, 4
      %p144 = por %p142, %p143
      %p146 = scmp.ne.s32.totalorder %s129, %s145
      %p147 = scmp.eq.s32.totalorder %s22, 0
      %p148 = por %p146, %p147
      %p149 = scmp.le.s32.totalorder 1, %s16
      %p150 = scmp.lt.s32.totalorder %s16, 6
      %p151 = pnand %p149, %p150
      %p152 = pneg %p151
      // Predicated region
      $region9: #{transformer_encoders2_forward.1} parent=5 // pred_check
        _
      $region10: #{transformer_encoders2_forward.1} parent=5 // pred_check_branch
        %154 = sbr.rel (%p151) target = $region12
      $region11: #{transformer_encoders2_forward.1} parent=5 // pred_region
        %s155 = ssub.s32 %s16, 1
        // Predicated region
        $region13: #{transformer_encoders2_forward.1} parent=11 // pred_check
          %p156 = pneg %p115
        $region14: #{transformer_encoders2_forward.1} parent=11 // pred_check_branch
          %158 = sbr.rel (%p156) target = $region16
        $region15: #{transformer_encoders2_forward.1} parent=11 // pred_region
          %160 = vsyncadd [#allocation5], 0
          %s161 = sshll.u32 %s3, 4
          %s162 = int_to_ptr.hbm [resolvable:$true] %s161
          %s163 = sshll.u32 [#allocation6], 4
          %s164 = int_to_ptr.vmem [resolvable:$true] %s163
          %169 = dma.hbm_to_vmem [thread:$0]  %s162, 6144, %s164, [#allocation5], 256, 256, 16
        $region16: #{transformer_encoders2_forward.1} parent=11 // pred_fallthru
          _
      $region12: #{transformer_encoders2_forward.1} parent=5 // pred_fallthru
        _
      %p170 = scmp.lt.s32.totalorder %s16, 5
      // Predicated region
      $region17: #{transformer_encoders2_forward.1} parent=5 // pred_check
        %p171 = pneg %p170
      $region18: #{transformer_encoders2_forward.1} parent=5 // pred_check_branch
        %173 = sbr.rel (%p171) target = $region20
      $region19: #{transformer_encoders2_forward.1} parent=5 // pred_region
        // Predicated region
        $region21: #{transformer_encoders2_forward.1} parent=19 // pred_check
          %p174 = pneg %p36
        $region22: #{transformer_encoders2_forward.1} parent=19 // pred_check_branch
          %176 = sbr.rel (%p174) target = $region24
        $region23: #{transformer_encoders2_forward.1} parent=19 // pred_region
          %s177 = smul.u32 2, %s16
          %p178 = scmp.lt.s32.totalorder %s177, 9
          %s179 = scalar_select %p178, %s177, 9
          %s180 = smul.addr %s179, 8
          %s181 = scalar_lea.vmem %s0, %s180
          %s182 = smul.u32 2, %s16
        $region24: #{transformer_encoders2_forward.1} parent=19 // pred_fallthru
          _
        // Predicated region
        $region25: #{transformer_encoders2_forward.1} parent=19 // pred_check
          %p183 = pneg %p62
        $region26: #{transformer_encoders2_forward.1} parent=19 // pred_check_branch
          %185 = sbr.rel (%p183) target = $region28
        $region27: #{transformer_encoders2_forward.1} parent=19 // pred_region
          %s186 = sand.u32 %s52, 1
          %s187 = scalar_lea.sflag [#allocation3], %s186
          %s188 = sand.u32 %s52, 1
          %s189 = smul.addr %s188, 1040
          %s190 = scalar_lea.vmem [#allocation2], %s189
          %s191 = smul.u32 130, %s16
          %193 = vsyncadd %s187, 0
          %s194 = smul.addr %s191, 8
          %s195 = scalar_lea.hbm %s1, %s194
          %s196 = sshll.u32 %s195, 4
          %s197 = int_to_ptr.hbm [resolvable:$true] %s196
          %s198 = sshll.u32 %s190, 4
          %s199 = int_to_ptr.vmem [resolvable:$true] %s198
          %204 = dma.hbm_to_vmem [thread:$0]  %s197, 16640, %s199, %s187, 128, 128, 8
        $region28: #{transformer_encoders2_forward.1} parent=19 // pred_fallthru
          _
        // Predicated region
        $region29: #{transformer_encoders2_forward.1} parent=19 // pred_check
          %p205 = pneg %p88
        $region30: #{transformer_encoders2_forward.1} parent=19 // pred_check_branch
          %207 = sbr.rel (%p205) target = $region32
        $region31: #{transformer_encoders2_forward.1} parent=19 // pred_region
          %s208 = sand.u32 %s16, 1
          %s209 = scalar_lea.sflag [#allocation5], %s208
          %s210 = sand.u32 %s78, 1
          %s211 = smul.addr %s210, 160
          %s212 = scalar_lea.vmem [#allocation4], %s211
          %s213 = smul.u32 20, %s16
          %215 = vsyncadd %s209, 0
          %s216 = smul.addr %s213, 8
          %s217 = scalar_lea.hbm %s2, %s216
          %s218 = sshll.u32 %s217, 4
          %s219 = int_to_ptr.hbm [resolvable:$true] %s218
          %s220 = sshll.u32 %s212, 4
          %s221 = int_to_ptr.vmem [resolvable:$true] %s220
          %226 = dma.hbm_to_vmem [thread:$0]  %s219, 2560, %s221, %s209, 128, 128, 8
        $region32: #{transformer_encoders2_forward.1} parent=19 // pred_fallthru
          _
      $region20: #{transformer_encoders2_forward.1} parent=5 // pred_fallthru
        _
      %p227 = scmp.le.s32.totalorder 1, %s16
      %p228 = scmp.lt.s32.totalorder %s16, 6
      %p229 = pnand %p227, %p228
      %p230 = pneg %p229
      // Predicated region
      $region33: #{transformer_encoders2_forward.1} parent=5 // pred_check
        _
      $region34: #{transformer_encoders2_forward.1} parent=5 // pred_check_branch
        %232 = sbr.rel (%p229) target = $region36
      $region35: #{transformer_encoders2_forward.1} parent=5 // pred_region
        %s233 = ssub.s32 %s16, 1
        %s234 = sand.u32 %s55, 1
        %s235 = scalar_lea.sflag [#allocation3], %s234
        %s236 = sand.u32 %s55, 1
        %s237 = smul.addr %s236, 1040
        %s238 = scalar_lea.vmem [#allocation2], %s237
        // Predicated region
        $region37: #{transformer_encoders2_forward.1} parent=35 // pred_check
          %p239 = pneg %p68
        $region38: #{transformer_encoders2_forward.1} parent=35 // pred_check_branch
          %241 = sbr.rel (%p239) target = $region40
        $region39: #{transformer_encoders2_forward.1} parent=35 // pred_region
          %243 = dma.done %s235, 16640
        $region40: #{transformer_encoders2_forward.1} parent=35 // pred_fallthru
          _
        %s244 = sand.u32 %s21, 1
        %s245 = scalar_lea.sflag [#allocation5], %s244
        %s246 = sand.u32 %s81, 1
        %s247 = smul.addr %s246, 160
        %s248 = scalar_lea.vmem [#allocation4], %s247
        // Predicated region
        $region41: #{transformer_encoders2_forward.1} parent=35 // pred_check
          %p249 = pneg %p94
        $region42: #{transformer_encoders2_forward.1} parent=35 // pred_check_branch
          %251 = sbr.rel (%p249) target = $region44
        $region43: #{transformer_encoders2_forward.1} parent=35 // pred_region
          %253 = dma.done %s245, 2560
        $region44: #{transformer_encoders2_forward.1} parent=35 // pred_fallthru
          _
        // Predicated region
        $region45: #{transformer_encoders2_forward.1} parent=35 // pred_check
          %p254 = pneg %p115
        $region46: #{transformer_encoders2_forward.1} parent=35 // pred_check_branch
          %256 = sbr.rel (%p254) target = $region48
        $region47: #{transformer_encoders2_forward.1} parent=35 // pred_region
          %258 = dma.done [#allocation5], 6144
        $region48: #{transformer_encoders2_forward.1} parent=35 // pred_fallthru
          _
        %s259 = smul.u32 2, %s21
        %p260 = scmp.lt.s32.totalorder %s259, 9
        %s261 = scalar_select %p260, %s259, 9
        %s262 = smul.addr %s261, 8
        %s263 = scalar_lea.vmem %s0, %s262
        %p264 = pneg %p42
        %p265 = pneg %p39
        %s266 = sand.u32 %s55, 1
        %s267 = scalar_lea.sflag [#allocation3], %s266
        %s268 = sand.u32 %s55, 1
        %s269 = smul.addr %s268, 1040
        %s270 = scalar_lea.vmem [#allocation2], %s269
        %p271 = pneg %p68
        %p272 = pneg %p65
        %s273 = sand.u32 %s21, 1
        %s274 = scalar_lea.sflag [#allocation5], %s273
        %s275 = sand.u32 %s81, 1
        %s276 = smul.addr %s275, 160
        %s277 = scalar_lea.vmem [#allocation4], %s276
        %p278 = pneg %p94
        %p279 = pneg %p91
        %p280 = pneg %p115
        %p281 = pneg %p112
        %p282 = pneg %p141
        %p283 = pneg %p138
        %s284 = smul.u32 2, %s21
        %p285 = scmp.lt.s32.totalorder %s284, 9
        %s286 = scalar_select %p285, %s284, 9
        %s287 = smul.addr %s286, 8
        %s288 = scalar_lea.vmem %s4, %s287
        %s289 = smul.u32 2, %s21
        %p290 = scmp.lt.s32.totalorder %s289, 9
        %s291 = scalar_select %p290, %s289, 9
        %s292 = smul.addr %s291, 8
        %s293 = scalar_lea.vmem %s0, %s292
        %s294 = smul.u32 2, %s21
        %s295 = smul.u32 130, %s21
        %s296 = smul.u32 20, %s21
        %s297 = smul.u32 2, %s21
        %p298 = scmp.lt.s32.totalorder %s297, 9
        %s299 = scalar_select %p298, %s297, 9
        %s300 = smul.addr %s299, 8
        %s301 = scalar_lea.vmem %s4, %s300
        %s302 = smul.u32 2, %s21
        %v303 = vld [vmem:[%s293] sm:$0xff]
        %v304 = vld [vmem:[%s293 + $0x8] sm:$0xff]
        %v305 = vld [vmem:[%s248] sm:$0xff]
        %v306 = vld [vmem:[%s248 + $0x8] sm:$0xff]
        %v307 = vld [vmem:[%s248 + $0x10] sm:$0xff]
        %v308 = vld [vmem:[%s248 + $0x18] sm:$0xff]
        %v309 = vld [vmem:[%s248 + $0x20] sm:$0xff]
        %v310 = vld [vmem:[%s248 + $0x28] sm:$0xff]
        %v311 = vld [vmem:[%s248 + $0x30] sm:$0xff]
        %v312 = vld [vmem:[%s248 + $0x38] sm:$0xff]
        %v313 = vld [vmem:[%s248 + $0x40] sm:$0xff]
        %v314 = vld [vmem:[%s248 + $0x48] sm:$0xff]
        %v315 = vld [vmem:[%s248 + $0x50] sm:$0xff]
        %v316 = vld [vmem:[%s248 + $0x58] sm:$0xff]
        %v317 = vld [vmem:[%s248 + $0x60] sm:$0xff]
        %v318 = vld [vmem:[%s248 + $0x68] sm:$0xff]
        %v319 = vld [vmem:[%s248 + $0x70] sm:$0xff]
        %v320 = vld [vmem:[%s248 + $0x78] sm:$0xff]
        %v321 = vld [vmem:[%s248 + $0x80] sm:$0xff]
        %v322 = vld [vmem:[%s248 + $0x88] sm:$0xff]
        %v323 = vld [vmem:[%s248 + $0x90] sm:$0xff]
        %v324 = vld [vmem:[%s248 + $0x98] sm:$0xff]
        %v325 = vld [vmem:[#allocation6] sm:$0xff]
        %v326 = vld [vmem:[#allocation6 + $0x8] sm:$0xff]
        %v327 = vld [vmem:[#allocation6 + $0x10] sm:$0xff]
        %v328 = vld [vmem:[#allocation6 + $0x18] sm:$0xff]
        %v329 = vld [vmem:[#allocation6 + $0x20] sm:$0xff]
        %v330 = vld [vmem:[#allocation6 + $0x28] sm:$0xff]
        %v331 = vld [vmem:[#allocation6 + $0x30] sm:$0xff]
        %v332 = vld [vmem:[#allocation6 + $0x38] sm:$0xff]
        %v333 = vld [vmem:[#allocation6 + $0x40] sm:$0xff]
        %v334 = vld [vmem:[#allocation6 + $0x48] sm:$0xff]
        %v335 = vld [vmem:[#allocation6 + $0x50] sm:$0xff]
        %v336 = vld [vmem:[#allocation6 + $0x58] sm:$0xff]
        %v337 = vld [vmem:[#allocation6 + $0x60] sm:$0xff]
        %v338 = vld [vmem:[#allocation6 + $0x68] sm:$0xff]
        %v339 = vld [vmem:[#allocation6 + $0x70] sm:$0xff]
        %v340 = vld [vmem:[#allocation6 + $0x78] sm:$0xff]
        %v341 = vld [vmem:[#allocation6 + $0x80] sm:$0xff]
        %v342 = vld [vmem:[#allocation6 + $0x88] sm:$0xff]
        %v343 = vld [vmem:[#allocation6 + $0x90] sm:$0xff]
        %v344 = vld [vmem:[#allocation6 + $0x98] sm:$0xff]
        %v345 = vld [vmem:[#allocation6 + $0xa0] sm:$0xff]
        %v346 = vld [vmem:[#allocation6 + $0xa8] sm:$0xff]
        %v347 = vld [vmem:[#allocation6 + $0xb0] sm:$0xff]
        %v348 = vld [vmem:[#allocation6 + $0xb8] sm:$0xff]
        %v349 = vld [vmem:[#allocation6 + $0xc0] sm:$0xff]
        %v350 = vld [vmem:[#allocation6 + $0xc8] sm:$0xff]
        %v351 = vld [vmem:[#allocation6 + $0xd0] sm:$0xff]
        %v352 = vld [vmem:[#allocation6 + $0xd8] sm:$0xff]
        %v353 = vld [vmem:[#allocation6 + $0xe0] sm:$0xff]
        %v354 = vld [vmem:[#allocation6 + $0xe8] sm:$0xff]
        %v355 = vld [vmem:[#allocation6 + $0xf0] sm:$0xff]
        %v356 = vld [vmem:[#allocation6 + $0xf8] sm:$0xff]
        %v357 = vld [vmem:[#allocation6 + $0x100] sm:$0xff]
        %v358 = vld [vmem:[#allocation6 + $0x108] sm:$0xff]
        %v359 = vld [vmem:[#allocation6 + $0x110] sm:$0xff]
        %v360 = vld [vmem:[#allocation6 + $0x118] sm:$0xff]
        %v361 = vld [vmem:[#allocation6 + $0x120] sm:$0xff]
        %v362 = vld [vmem:[#allocation6 + $0x128] sm:$0xff]
        %v363 = vld [vmem:[#allocation6 + $0x130] sm:$0xff]
        %v364 = vld [vmem:[#allocation6 + $0x138] sm:$0xff]
        %v365 = vld [vmem:[#allocation6 + $0x140] sm:$0xff]
        %v366 = vld [vmem:[#allocation6 + $0x148] sm:$0xff]
        %v367 = vld [vmem:[#allocation6 + $0x150] sm:$0xff]
        %v368 = vld [vmem:[#allocation6 + $0x158] sm:$0xff]
        %v369 = vld [vmem:[#allocation6 + $0x160] sm:$0xff]
        %v370 = vld [vmem:[#allocation6 + $0x168] sm:$0xff]
        %v371 = vld [vmem:[#allocation6 + $0x170] sm:$0xff]
        %v372 = vld [vmem:[#allocation6 + $0x178] sm:$0xff]
        %v373 = vld [vmem:[%s238 + $0x400] sm:$0xff]
        %v374 = vld [vmem:[%s238 + $0x408] sm:$0xff]
        %v375 = vld [vmem:[%s238] sm:$0xff]
        %v376 = vld [vmem:[%s238 + $0x8] sm:$0xff]
        %v377 = vld [vmem:[%s238 + $0x10] sm:$0xff]
        %v378 = vld [vmem:[%s238 + $0x18] sm:$0xff]
        %v379 = vld [vmem:[%s238 + $0x20] sm:$0xff]
        %v380 = vld [vmem:[%s238 + $0x28] sm:$0xff]
        %v381 = vld [vmem:[%s238 + $0x30] sm:$0xff]
        %v382 = vld [vmem:[%s238 + $0x38] sm:$0xff]
        %v383 = vld [vmem:[%s238 + $0x40] sm:$0xff]
        %v384 = vld [vmem:[%s238 + $0x48] sm:$0xff]
        %v385 = vld [vmem:[%s238 + $0x50] sm:$0xff]
        %v386 = vld [vmem:[%s238 + $0x58] sm:$0xff]
        %v387 = vld [vmem:[%s238 + $0x60] sm:$0xff]
        %v388 = vld [vmem:[%s238 + $0x68] sm:$0xff]
        %v389 = vld [vmem:[%s238 + $0x70] sm:$0xff]
        %v390 = vld [vmem:[%s238 + $0x78] sm:$0xff]
        %v391 = vperm.slane %v373, 0
        %392 = vmatpush.msra.mxu0 %v390
        %393 = vmatpush.msra.mxu0 %v389
        %394 = vmatpush.msra.mxu0 %v388
        %395 = vmatpush.msra.mxu0 %v387
        %396 = vmatpush.msra.mxu0 %v386
        %397 = vmatpush.msra.mxu0 %v385
        %398 = vmatpush.msra.mxu0 %v384
        %399 = vmatpush.msra.mxu0 %v383
        %400 = vmatpush.msra.mxu0 %v382
        %401 = vmatpush.msra.mxu0 %v381
        %402 = vmatpush.msra.mxu0 %v380
        %403 = vmatpush.msra.mxu0 %v379
        %404 = vmatpush.msra.mxu0 %v378
        %405 = vmatpush.msra.mxu0 %v377
        %406 = vmatpush.msra.mxu0 %v376
        %407 = vmatpush.msra.mxu0 %v375
        %408 = vmatmul.f32.gmra.mxu0 %v303
        %v409 = vpop.f32.mrf.mxu0
        %v410 = vadd.f32 %v391, %v409
        %411 = vmatmul.f32.gmra.mxu0 %v304
        %v412 = vpop.f32.mrf.mxu0
        %v413 = vadd.f32 %v391, %v412
        %414 = vdwg.mxu0
        %v415 = vld [vmem:[%s238 + $0x80] sm:$0xff]
        %v416 = vld [vmem:[%s238 + $0x88] sm:$0xff]
        %v417 = vld [vmem:[%s238 + $0x90] sm:$0xff]
        %v418 = vld [vmem:[%s238 + $0x98] sm:$0xff]
        %v419 = vld [vmem:[%s238 + $0xa0] sm:$0xff]
        %v420 = vld [vmem:[%s238 + $0xa8] sm:$0xff]
        %v421 = vld [vmem:[%s238 + $0xb0] sm:$0xff]
        %v422 = vld [vmem:[%s238 + $0xb8] sm:$0xff]
        %v423 = vld [vmem:[%s238 + $0xc0] sm:$0xff]
        %v424 = vld [vmem:[%s238 + $0xc8] sm:$0xff]
        %v425 = vld [vmem:[%s238 + $0xd0] sm:$0xff]
        %v426 = vld [vmem:[%s238 + $0xd8] sm:$0xff]
        %v427 = vld [vmem:[%s238 + $0xe0] sm:$0xff]
        %v428 = vld [vmem:[%s238 + $0xe8] sm:$0xff]
        %v429 = vld [vmem:[%s238 + $0xf0] sm:$0xff]
        %v430 = vld [vmem:[%s238 + $0xf8] sm:$0xff]
        %v431 = vperm.slane %v373, 1
        %432 = vmatpush.msra.mxu0 %v430
        %433 = vmatpush.msra.mxu0 %v429
        %434 = vmatpush.msra.mxu0 %v428
        %435 = vmatpush.msra.mxu0 %v427
        %436 = vmatpush.msra.mxu0 %v426
        %437 = vmatpush.msra.mxu0 %v425
        %438 = vmatpush.msra.mxu0 %v424
        %439 = vmatpush.msra.mxu0 %v423
        %440 = vmatpush.msra.mxu0 %v422
        %441 = vmatpush.msra.mxu0 %v421
        %442 = vmatpush.msra.mxu0 %v420
        %443 = vmatpush.msra.mxu0 %v419
        %444 = vmatpush.msra.mxu0 %v418
        %445 = vmatpush.msra.mxu0 %v417
        %446 = vmatpush.msra.mxu0 %v416
        %447 = vmatpush.msra.mxu0 %v415
        %448 = vmatmul.f32.gmra.mxu0 %v303
        %v449 = vpop.f32.mrf.mxu0
        %v450 = vadd.f32 %v431, %v449
        %451 = vmatmul.f32.gmra.mxu0 %v304
        %v452 = vpop.f32.mrf.mxu0
        %v453 = vadd.f32 %v431, %v452
        %454 = vdwg.mxu0
        %v455 = vld [vmem:[%s238 + $0x100] sm:$0xff]
        %v456 = vld [vmem:[%s238 + $0x108] sm:$0xff]
        %v457 = vld [vmem:[%s238 + $0x110] sm:$0xff]
        %v458 = vld [vmem:[%s238 + $0x118] sm:$0xff]
        %v459 = vld [vmem:[%s238 + $0x120] sm:$0xff]
        %v460 = vld [vmem:[%s238 + $0x128] sm:$0xff]
        %v461 = vld [vmem:[%s238 + $0x130] sm:$0xff]
        %v462 = vld [vmem:[%s238 + $0x138] sm:$0xff]
        %v463 = vld [vmem:[%s238 + $0x140] sm:$0xff]
        %v464 = vld [vmem:[%s238 + $0x148] sm:$0xff]
        %v465 = vld [vmem:[%s238 + $0x150] sm:$0xff]
        %v466 = vld [vmem:[%s238 + $0x158] sm:$0xff]
        %v467 = vld [vmem:[%s238 + $0x160] sm:$0xff]
        %v468 = vld [vmem:[%s238 + $0x168] sm:$0xff]
        %v469 = vld [vmem:[%s238 + $0x170] sm:$0xff]
        %v470 = vld [vmem:[%s238 + $0x178] sm:$0xff]
        %v471 = vperm.slane %v373, 2
        %472 = vmatpush.msra.mxu0 %v470
        %473 = vmatpush.msra.mxu0 %v469
        %474 = vmatpush.msra.mxu0 %v468
        %475 = vmatpush.msra.mxu0 %v467
        %476 = vmatpush.msra.mxu0 %v466
        %477 = vmatpush.msra.mxu0 %v465
        %478 = vmatpush.msra.mxu0 %v464
        %479 = vmatpush.msra.mxu0 %v463
        %480 = vmatpush.msra.mxu0 %v462
        %481 = vmatpush.msra.mxu0 %v461
        %482 = vmatpush.msra.mxu0 %v460
        %483 = vmatpush.msra.mxu0 %v459
        %484 = vmatpush.msra.mxu0 %v458
        %485 = vmatpush.msra.mxu0 %v457
        %486 = vmatpush.msra.mxu0 %v456
        %487 = vmatpush.msra.mxu0 %v455
        %488 = vmatmul.f32.gmra.mxu0 %v303
        %v489 = vpop.f32.mrf.mxu0
        %v490 = vadd.f32 %v471, %v489
        %491 = vmatmul.f32.gmra.mxu0 %v304
        %v492 = vpop.f32.mrf.mxu0
        %v493 = vadd.f32 %v471, %v492
        %494 = vdwg.mxu0
        %v495 = vmul.f32 %v450, %v305
        %v496 = vmul.f32 %v453, %v306
        %v497 = vmul.f32 %v450, %v307
        %v498 = vmul.f32 %v453, %v308
        %v499 = vmul.f32 %v450, %v309
        %v500 = vmul.f32 %v453, %v310
        %v501 = vmul.f32 %v450, %v311
        %v502 = vmul.f32 %v453, %v312
        %v503 = vmul.f32 %v450, %v313
        %v504 = vmul.f32 %v453, %v314
        %v505 = vmul.f32 %v450, %v315
        %v506 = vmul.f32 %v453, %v316
        %v507 = vmul.f32 %v450, %v317
        %v508 = vmul.f32 %v453, %v318
        %v509 = vmul.f32 %v450, %v319
        %v510 = vmul.f32 %v453, %v320
        %v511 = vmul.f32 %v450, %v321
        %v512 = vmul.f32 %v453, %v322
        %v513 = vmul.f32 %v450, %v323
        %v514 = vmul.f32 %v453, %v324
        %v515 = vmul.f32 %v490, %v305
        %v516 = vmul.f32 %v493, %v306
        %v517 = vmul.f32 %v490, %v307
        %v518 = vmul.f32 %v493, %v308
        %v519 = vmul.f32 %v490, %v309
        %v520 = vmul.f32 %v493, %v310
        %v521 = vmul.f32 %v490, %v311
        %v522 = vmul.f32 %v493, %v312
        %v523 = vmul.f32 %v490, %v313
        %v524 = vmul.f32 %v493, %v314
        %v525 = vmul.f32 %v490, %v315
        %v526 = vmul.f32 %v493, %v316
        %v527 = vmul.f32 %v490, %v317
        %v528 = vmul.f32 %v493, %v318
        %v529 = vmul.f32 %v490, %v319
        %v530 = vmul.f32 %v493, %v320
        %v531 = vmul.f32 %v490, %v321
        %v532 = vmul.f32 %v493, %v322
        %v533 = vmul.f32 %v490, %v323
        %v534 = vmul.f32 %v493, %v324
        %535 = vmatpush.xpose.msra.mxu0 %v510
        %536 = vmatpush.xpose.msra.mxu0 %v509
        %537 = vmatpush.xpose.msra.mxu0 %v508
        %538 = vmatpush.xpose.msra.mxu0 %v507
        %539 = vmatpush.xpose.msra.mxu0 %v506
        %540 = vmatpush.xpose.msra.mxu0 %v505
        %541 = vmatpush.xpose.msra.mxu0 %v504
        %542 = vmatpush.xpose.msra.mxu0 %v503
        %543 = vmatpush.xpose.msra.mxu0 %v502
        %544 = vmatpush.xpose.msra.mxu0 %v501
        %545 = vmatpush.xpose.msra.mxu0 %v500
        %546 = vmatpush.xpose.msra.mxu0 %v499
        %547 = vmatpush.xpose.msra.mxu0 %v498
        %548 = vmatpush.xpose.msra.mxu0 %v497
        %549 = vmatpush.xpose.msra.mxu0 %v496
        %550 = vmatpush.xpose.msra.mxu0 %v495
        %551 = vmatmul.f32.gmra.mxu0 %v410
        %v552 = vpop.f32.mrf.mxu0
        %v553 = vadd.f32 %v325, %v552
        %554 = vmatmul.f32.gmra.mxu0 %v413
        %v555 = vpop.f32.mrf.mxu0
        %v556 = vadd.f32 %v327, %v555
        %557 = vdwg.mxu0
        %558 = vmatpush.xpose.msra.mxu0 0.0
        %559 = vmatpush.xpose.msra.mxu0 0.0
        %560 = vmatpush.xpose.msra.mxu0 0.0
        %561 = vmatpush.xpose.msra.mxu0 0.0
        %562 = vmatpush.xpose.msra.mxu0 0.0
        %563 = vmatpush.xpose.msra.mxu0 0.0
        %564 = vmatpush.xpose.msra.mxu0 0.0
        %565 = vmatpush.xpose.msra.mxu0 0.0
        %566 = vmatpush.xpose.msra.mxu0 0.0
        %567 = vmatpush.xpose.msra.mxu0 0.0
        %568 = vmatpush.xpose.msra.mxu0 0.0
        %569 = vmatpush.xpose.msra.mxu0 0.0
        %570 = vmatpush.xpose.msra.mxu0 %v514
        %571 = vmatpush.xpose.msra.mxu0 %v513
        %572 = vmatpush.xpose.msra.mxu0 %v512
        %573 = vmatpush.xpose.msra.mxu0 %v511
        %574 = vmatmul.f32.gmra.mxu0 %v410
        %v575 = vpop.f32.mrf.mxu0
        %v576 = vadd.f32 %v326, %v575
        %577 = vmatmul.f32.gmra.mxu0 %v413
        %v578 = vpop.f32.mrf.mxu0
        %v579 = vadd.f32 %v328, %v578
        %580 = vdwg.mxu0
        %vm581 = vcmask 261120
        %v582 = vsel %vm581, %v576, -inf
        %v583 = vmax.f32 %v553, %v582
        %584 = vmax.xlane.f32.xlu0 %v583
        %v585 = vpop.xlane.xlu0 %584
        %v586 = vsel %vm581, %v579, -inf
        %v587 = vmax.f32 %v556, %v586
        %588 = vmax.xlane.f32.xlu0 %v587
        %v589 = vpop.xlane.xlu0 %588
        %v590 = vsub.f32 %v553, %v585
        %v591 = vsub.f32 %v576, %v585
        %v592 = vsub.f32 %v556, %v589
        %v593 = vsub.f32 %v579, %v589
        %v594 = vmul.f32 %v590, 1.442695
        %v595 = vpow.pop %v594
        %v596 = vmul.f32 %v591, 1.442695
        %v597 = vpow.pop %v596
        %v598 = vmul.f32 %v592, 1.442695
        %v599 = vpow.pop %v598
        %v600 = vmul.f32 %v593, 1.442695
        %v601 = vpow.pop %v600
        %v603 = vsel %vm581, %v597, 0
        %v606 = vsel %vm581, %v601, 0
        %608 = vmatpush.msra.mxu0 %v363
        %609 = vmatpush.msra.mxu0 %v361
        %610 = vmatpush.msra.mxu0 %v359
        %611 = vmatpush.msra.mxu0 %v357
        %612 = vmatpush.msra.mxu0 %v355
        %613 = vmatpush.msra.mxu0 %v353
        %614 = vmatpush.msra.mxu0 %v351
        %615 = vmatpush.msra.mxu0 %v349
        %616 = vmatpush.msra.mxu0 %v347
        %617 = vmatpush.msra.mxu0 %v345
        %618 = vmatpush.msra.mxu0 %v343
        %619 = vmatpush.msra.mxu0 %v341
        %620 = vmatpush.msra.mxu0 %v339
        %621 = vmatpush.msra.mxu0 %v337
        %622 = vmatpush.msra.mxu0 %v335
        %623 = vmatpush.msra.mxu0 %v333
        %624 = vmatmul.f32.gmra.mxu0 %v595
        %v625 = vpop.f32.mrf.mxu0
        %v626 = vadd.f32 %v329, %v625
        %627 = vmatmul.f32.gmra.mxu0 %v599
        %v628 = vpop.f32.mrf.mxu0
        %v629 = vadd.f32 %v331, %v628
        %630 = vdwg.mxu0
        %631 = vmatpush.msra.mxu0 0.0
        %632 = vmatpush.msra.mxu0 0.0
        %633 = vmatpush.msra.mxu0 0.0
        %634 = vmatpush.msra.mxu0 0.0
        %635 = vmatpush.msra.mxu0 0.0
        %636 = vmatpush.msra.mxu0 0.0
        %637 = vmatpush.msra.mxu0 0.0
        %638 = vmatpush.msra.mxu0 0.0
        %639 = vmatpush.msra.mxu0 0.0
        %640 = vmatpush.msra.mxu0 0.0
        %641 = vmatpush.msra.mxu0 0.0
        %642 = vmatpush.msra.mxu0 0.0
        %643 = vmatpush.msra.mxu0 %v371
        %644 = vmatpush.msra.mxu0 %v369
        %645 = vmatpush.msra.mxu0 %v367
        %646 = vmatpush.msra.mxu0 %v365
        %647 = vmatmul.f32.gmra.mxu0 %v603
        %v648 = vpop.f32.mrf.mxu0
        %v649 = vadd.f32 %v626, %v648
        %650 = vmatmul.f32.gmra.mxu0 %v606
        %v651 = vpop.f32.mrf.mxu0
        %v652 = vadd.f32 %v629, %v651
        %653 = vdwg.mxu0
        %654 = vmatpush.msra.mxu0 %v364
        %655 = vmatpush.msra.mxu0 %v362
        %656 = vmatpush.msra.mxu0 %v360
        %657 = vmatpush.msra.mxu0 %v358
        %658 = vmatpush.msra.mxu0 %v356
        %659 = vmatpush.msra.mxu0 %v354
        %660 = vmatpush.msra.mxu0 %v352
        %661 = vmatpush.msra.mxu0 %v350
        %662 = vmatpush.msra.mxu0 %v348
        %663 = vmatpush.msra.mxu0 %v346
        %664 = vmatpush.msra.mxu0 %v344
        %665 = vmatpush.msra.mxu0 %v342
        %666 = vmatpush.msra.mxu0 %v340
        %667 = vmatpush.msra.mxu0 %v338
        %668 = vmatpush.msra.mxu0 %v336
        %669 = vmatpush.msra.mxu0 %v334
        %670 = vmatmul.f32.gmra.mxu0 %v595
        %v671 = vpop.f32.mrf.mxu0
        %v672 = vadd.f32 %v330, %v671
        %673 = vmatmul.f32.gmra.mxu0 %v599
        %v674 = vpop.f32.mrf.mxu0
        %v675 = vadd.f32 %v332, %v674
        %676 = vdwg.mxu0
        %677 = vmatpush.msra.mxu0 0.0
        %678 = vmatpush.msra.mxu0 0.0
        %679 = vmatpush.msra.mxu0 0.0
        %680 = vmatpush.msra.mxu0 0.0
        %681 = vmatpush.msra.mxu0 0.0
        %682 = vmatpush.msra.mxu0 0.0
        %683 = vmatpush.msra.mxu0 0.0
        %684 = vmatpush.msra.mxu0 0.0
        %685 = vmatpush.msra.mxu0 0.0
        %686 = vmatpush.msra.mxu0 0.0
        %687 = vmatpush.msra.mxu0 0.0
        %688 = vmatpush.msra.mxu0 0.0
        %689 = vmatpush.msra.mxu0 %v372
        %690 = vmatpush.msra.mxu0 %v370
        %691 = vmatpush.msra.mxu0 %v368
        %692 = vmatpush.msra.mxu0 %v366
        %693 = vmatmul.f32.gmra.mxu0 %v603
        %v694 = vpop.f32.mrf.mxu0
        %v695 = vadd.f32 %v672, %v694
        %696 = vmatmul.f32.gmra.mxu0 %v606
        %v697 = vpop.f32.mrf.mxu0
        %v698 = vadd.f32 %v675, %v697
        %699 = vdwg.mxu0
        %v700 = vrcp.pop %v649
        %v701 = vmul.f32 %v649, %v700
        %v702 = vsub.f32 1.0, %v701
        %v703 = vmul.f32 %v700, %v702
        %v704 = vadd.f32 %v700, %v703
        %vm705 = vweird.f32 %v649
        %vm706 = vweird.f32 %v700
        %vm707 = vmor %vm705, %vm706
        %v708 = vsel %vm707, %v700, %v704
        %v709 = vand.u32 2147483647, %v649
        %vm710 = vcmp.eq.f32.partialorder %v709, 8.507059e+37
        %v711 = vand.u32 %v649, 2147483648
        %v712 = vor.u32 1.1754944e-38, %v711
        %v713 = vsel %vm710, %v712, %v708
        %v714 = vmul.f32 %v595, %v713
        %v715 = vrcp.pop %v695
        %v716 = vmul.f32 %v695, %v715
        %v717 = vsub.f32 1.0, %v716
        %v718 = vmul.f32 %v715, %v717
        %v719 = vadd.f32 %v715, %v718
        %vm720 = vweird.f32 %v695
        %vm721 = vweird.f32 %v715
        %vm722 = vmor %vm720, %vm721
        %v723 = vsel %vm722, %v715, %v719
        %v724 = vand.u32 2147483647, %v695
        %vm725 = vcmp.eq.f32.partialorder %v724, 8.507059e+37
        %v726 = vand.u32 %v695, 2147483648
        %v727 = vor.u32 1.1754944e-38, %v726
        %v728 = vsel %vm725, %v727, %v723
        %v729 = vmul.f32 %v597, %v728
        %v730 = vrcp.pop %v652
        %v731 = vmul.f32 %v652, %v730
        %v732 = vsub.f32 1.0, %v731
        %v733 = vmul.f32 %v730, %v732
        %v734 = vadd.f32 %v730, %v733
        %vm735 = vweird.f32 %v652
        %vm736 = vweird.f32 %v730
        %vm737 = vmor %vm735, %vm736
        %v738 = vsel %vm737, %v730, %v734
        %v739 = vand.u32 2147483647, %v652
        %vm740 = vcmp.eq.f32.partialorder %v739, 8.507059e+37
        %v741 = vand.u32 %v652, 2147483648
        %v742 = vor.u32 1.1754944e-38, %v741
        %v743 = vsel %vm740, %v742, %v738
        %v744 = vmul.f32 %v599, %v743
        %v745 = vrcp.pop %v698
        %v746 = vmul.f32 %v698, %v745
        %v747 = vsub.f32 1.0, %v746
        %v748 = vmul.f32 %v745, %v747
        %v749 = vadd.f32 %v745, %v748
        %vm750 = vweird.f32 %v698
        %vm751 = vweird.f32 %v745
        %vm752 = vmor %vm750, %vm751
        %v753 = vsel %vm752, %v745, %v749
        %v754 = vand.u32 2147483647, %v698
        %vm755 = vcmp.eq.f32.partialorder %v754, 8.507059e+37
        %v756 = vand.u32 %v698, 2147483648
        %v757 = vor.u32 1.1754944e-38, %v756
        %v758 = vsel %vm755, %v757, %v753
        %v759 = vmul.f32 %v601, %v758
        %v761 = vsel %vm581, %v729, 0
        %v764 = vsel %vm581, %v759, 0
        %766 = vmatpush.msra.mxu0 %v530
        %767 = vmatpush.msra.mxu0 %v529
        %768 = vmatpush.msra.mxu0 %v528
        %769 = vmatpush.msra.mxu0 %v527
        %770 = vmatpush.msra.mxu0 %v526
        %771 = vmatpush.msra.mxu0 %v525
        %772 = vmatpush.msra.mxu0 %v524
        %773 = vmatpush.msra.mxu0 %v523
        %774 = vmatpush.msra.mxu0 %v522
        %775 = vmatpush.msra.mxu0 %v521
        %776 = vmatpush.msra.mxu0 %v520
        %777 = vmatpush.msra.mxu0 %v519
        %778 = vmatpush.msra.mxu0 %v518
        %779 = vmatpush.msra.mxu0 %v517
        %780 = vmatpush.msra.mxu0 %v516
        %781 = vmatpush.msra.mxu0 %v515
        %782 = vmatmul.f32.gmra.mxu0 %v714
        %v783 = vpop.f32.mrf.mxu0
        %v784 = vadd.f32 0.0, %v783
        %785 = vmatmul.f32.gmra.mxu0 %v744
        %v786 = vpop.f32.mrf.mxu0
        %v787 = vadd.f32 0.0, %v786
        %788 = vdwg.mxu0
        %789 = vmatpush.msra.mxu0 0.0
        %790 = vmatpush.msra.mxu0 0.0
        %791 = vmatpush.msra.mxu0 0.0
        %792 = vmatpush.msra.mxu0 0.0
        %793 = vmatpush.msra.mxu0 0.0
        %794 = vmatpush.msra.mxu0 0.0
        %795 = vmatpush.msra.mxu0 0.0
        %796 = vmatpush.msra.mxu0 0.0
        %797 = vmatpush.msra.mxu0 0.0
        %798 = vmatpush.msra.mxu0 0.0
        %799 = vmatpush.msra.mxu0 0.0
        %800 = vmatpush.msra.mxu0 0.0
        %801 = vmatpush.msra.mxu0 %v534
        %802 = vmatpush.msra.mxu0 %v533
        %803 = vmatpush.msra.mxu0 %v532
        %804 = vmatpush.msra.mxu0 %v531
        %805 = vmatmul.f32.gmra.mxu0 %v761
        %v806 = vpop.f32.mrf.mxu0
        %v807 = vadd.f32 %v784, %v806
        %808 = vmatmul.f32.gmra.mxu0 %v764
        %v809 = vpop.f32.mrf.mxu0
        %v810 = vadd.f32 %v787, %v809
        %811 = vdwg.mxu0
        %v812 = vld [vmem:[%s238 + $0x180] sm:$0xff]
        %v813 = vld [vmem:[%s238 + $0x188] sm:$0xff]
        %v814 = vld [vmem:[%s238 + $0x190] sm:$0xff]
        %v815 = vld [vmem:[%s238 + $0x198] sm:$0xff]
        %v816 = vld [vmem:[%s238 + $0x1a0] sm:$0xff]
        %v817 = vld [vmem:[%s238 + $0x1a8] sm:$0xff]
        %v818 = vld [vmem:[%s238 + $0x1b0] sm:$0xff]
        %v819 = vld [vmem:[%s238 + $0x1b8] sm:$0xff]
        %v820 = vld [vmem:[%s238 + $0x1c0] sm:$0xff]
        %v821 = vld [vmem:[%s238 + $0x1c8] sm:$0xff]
        %v822 = vld [vmem:[%s238 + $0x1d0] sm:$0xff]
        %v823 = vld [vmem:[%s238 + $0x1d8] sm:$0xff]
        %v824 = vld [vmem:[%s238 + $0x1e0] sm:$0xff]
        %v825 = vld [vmem:[%s238 + $0x1e8] sm:$0xff]
        %v826 = vld [vmem:[%s238 + $0x1f0] sm:$0xff]
        %v827 = vld [vmem:[%s238 + $0x1f8] sm:$0xff]
        %v828 = vperm.slane %v373, 3
        %829 = vmatpush.msra.mxu0 %v827
        %830 = vmatpush.msra.mxu0 %v826
        %831 = vmatpush.msra.mxu0 %v825
        %832 = vmatpush.msra.mxu0 %v824
        %833 = vmatpush.msra.mxu0 %v823
        %834 = vmatpush.msra.mxu0 %v822
        %835 = vmatpush.msra.mxu0 %v821
        %836 = vmatpush.msra.mxu0 %v820
        %837 = vmatpush.msra.mxu0 %v819
        %838 = vmatpush.msra.mxu0 %v818
        %839 = vmatpush.msra.mxu0 %v817
        %840 = vmatpush.msra.mxu0 %v816
        %841 = vmatpush.msra.mxu0 %v815
        %842 = vmatpush.msra.mxu0 %v814
        %843 = vmatpush.msra.mxu0 %v813
        %844 = vmatpush.msra.mxu0 %v812
        %845 = vmatmul.f32.gmra.mxu0 %v807
        %v846 = vpop.f32.mrf.mxu0
        %v847 = vadd.f32 %v828, %v846
        %848 = vmatmul.f32.gmra.mxu0 %v810
        %v849 = vpop.f32.mrf.mxu0
        %v850 = vadd.f32 %v828, %v849
        %851 = vdwg.mxu0
        %v852 = vld [vmem:[%s238 + $0x380] sm:$0xff]
        %v853 = vld [vmem:[%s238 + $0x388] sm:$0xff]
        %v854 = vld [vmem:[%s238 + $0x390] sm:$0xff]
        %v855 = vld [vmem:[%s238 + $0x398] sm:$0xff]
        %v856 = vld [vmem:[%s238 + $0x3a0] sm:$0xff]
        %v857 = vld [vmem:[%s238 + $0x3a8] sm:$0xff]
        %v858 = vld [vmem:[%s238 + $0x3b0] sm:$0xff]
        %v859 = vld [vmem:[%s238 + $0x3b8] sm:$0xff]
        %v860 = vld [vmem:[%s238 + $0x3c0] sm:$0xff]
        %v861 = vld [vmem:[%s238 + $0x3c8] sm:$0xff]
        %v862 = vld [vmem:[%s238 + $0x3d0] sm:$0xff]
        %v863 = vld [vmem:[%s238 + $0x3d8] sm:$0xff]
        %v864 = vld [vmem:[%s238 + $0x3e0] sm:$0xff]
        %v865 = vld [vmem:[%s238 + $0x3e8] sm:$0xff]
        %v866 = vld [vmem:[%s238 + $0x3f0] sm:$0xff]
        %v867 = vld [vmem:[%s238 + $0x3f8] sm:$0xff]
        %v868 = vadd.f32 %v303, %v847
        %v869 = vadd.f32 %v304, %v850
        %870 = vmatpush.msra.mxu0 %v867
        %871 = vmatpush.msra.mxu0 %v866
        %872 = vmatpush.msra.mxu0 %v865
        %873 = vmatpush.msra.mxu0 %v864
        %874 = vmatpush.msra.mxu0 %v863
        %875 = vmatpush.msra.mxu0 %v862
        %876 = vmatpush.msra.mxu0 %v861
        %877 = vmatpush.msra.mxu0 %v860
        %878 = vmatpush.msra.mxu0 %v859
        %879 = vmatpush.msra.mxu0 %v858
        %880 = vmatpush.msra.mxu0 %v857
        %881 = vmatpush.msra.mxu0 %v856
        %882 = vmatpush.msra.mxu0 %v855
        %883 = vmatpush.msra.mxu0 %v854
        %884 = vmatpush.msra.mxu0 %v853
        %885 = vmatpush.msra.mxu0 %v852
        %886 = vmatmul.f32.gmra.mxu0 %v868
        %v887 = vpop.f32.mrf.mxu0
        %v888 = vadd.f32 0.0, %v887
        %889 = vmatmul.f32.gmra.mxu0 %v869
        %v890 = vpop.f32.mrf.mxu0
        %v891 = vadd.f32 0.0, %v890
        %892 = vdwg.mxu0
        %v893 = vsub.f32 %v868, %v888
        %v894 = vsub.f32 %v869, %v891
        %v895 = vmul.f32 %v893, %v893
        %v896 = vmul.f32 %v894, %v894
        %897 = vmatpush.msra.mxu0 %v867
        %898 = vmatpush.msra.mxu0 %v866
        %899 = vmatpush.msra.mxu0 %v865
        %900 = vmatpush.msra.mxu0 %v864
        %901 = vmatpush.msra.mxu0 %v863
        %902 = vmatpush.msra.mxu0 %v862
        %903 = vmatpush.msra.mxu0 %v861
        %904 = vmatpush.msra.mxu0 %v860
        %905 = vmatpush.msra.mxu0 %v859
        %906 = vmatpush.msra.mxu0 %v858
        %907 = vmatpush.msra.mxu0 %v857
        %908 = vmatpush.msra.mxu0 %v856
        %909 = vmatpush.msra.mxu0 %v855
        %910 = vmatpush.msra.mxu0 %v854
        %911 = vmatpush.msra.mxu0 %v853
        %912 = vmatpush.msra.mxu0 %v852
        %913 = vmatmul.f32.gmra.mxu0 %v895
        %v914 = vpop.f32.mrf.mxu0
        %v915 = vadd.f32 1e-05, %v914
        %916 = vmatmul.f32.gmra.mxu0 %v896
        %v917 = vpop.f32.mrf.mxu0
        %v918 = vadd.f32 1e-05, %v917
        %919 = vdwg.mxu0
        %v920 = vrsqrt.pop %v915
        %v921 = vmul.f32 %v920, %v915
        %v922 = vmul.f32 %v921, %v920
        %v923 = vmul.f32 0.5, %v922
        %v924 = vsub.f32 1.5, %v923
        %v925 = vmul.f32 %v920, %v924
        %vm926 = vweird.f32 %v915
        %vm927 = vweird.f32 %v920
        %vm928 = vmor %vm926, %vm927
        %v929 = vsel %vm928, %v920, %v925
        %v930 = vrsqrt.pop %v918
        %v931 = vmul.f32 %v930, %v918
        %v932 = vmul.f32 %v931, %v930
        %v933 = vmul.f32 0.5, %v932
        %v934 = vsub.f32 1.5, %v933
        %v935 = vmul.f32 %v930, %v934
        %vm936 = vweird.f32 %v918
        %vm937 = vweird.f32 %v930
        %vm938 = vmor %vm936, %vm937
        %v939 = vsel %vm938, %v930, %v935
        %v940 = vmul.f32 %v893, %v929
        %v941 = vmul.f32 %v894, %v939
        %v942 = vperm.slane %v373, 6
        %v943 = vmul.f32 %v940, %v942
        %v944 = vmul.f32 %v941, %v942
        %v945 = vperm.slane %v373, 7
        %v946 = vadd.f32 %v943, %v945
        %v947 = vadd.f32 %v944, %v945
        %v948 = vld [vmem:[%s238 + $0x200] sm:$0xff]
        %v949 = vld [vmem:[%s238 + $0x208] sm:$0xff]
        %v950 = vld [vmem:[%s238 + $0x210] sm:$0xff]
        %v951 = vld [vmem:[%s238 + $0x218] sm:$0xff]
        %v952 = vld [vmem:[%s238 + $0x220] sm:$0xff]
        %v953 = vld [vmem:[%s238 + $0x228] sm:$0xff]
        %v954 = vld [vmem:[%s238 + $0x230] sm:$0xff]
        %v955 = vld [vmem:[%s238 + $0x238] sm:$0xff]
        %v956 = vld [vmem:[%s238 + $0x240] sm:$0xff]
        %v957 = vld [vmem:[%s238 + $0x248] sm:$0xff]
        %v958 = vld [vmem:[%s238 + $0x250] sm:$0xff]
        %v959 = vld [vmem:[%s238 + $0x258] sm:$0xff]
        %v960 = vld [vmem:[%s238 + $0x260] sm:$0xff]
        %v961 = vld [vmem:[%s238 + $0x268] sm:$0xff]
        %v962 = vld [vmem:[%s238 + $0x270] sm:$0xff]
        %v963 = vld [vmem:[%s238 + $0x278] sm:$0xff]
        %v964 = vperm.slane %v373, 4
        %965 = vmatpush.msra.mxu0 %v963
        %966 = vmatpush.msra.mxu0 %v962
        %967 = vmatpush.msra.mxu0 %v961
        %968 = vmatpush.msra.mxu0 %v960
        %969 = vmatpush.msra.mxu0 %v959
        %970 = vmatpush.msra.mxu0 %v958
        %971 = vmatpush.msra.mxu0 %v957
        %972 = vmatpush.msra.mxu0 %v956
        %973 = vmatpush.msra.mxu0 %v955
        %974 = vmatpush.msra.mxu0 %v954
        %975 = vmatpush.msra.mxu0 %v953
        %976 = vmatpush.msra.mxu0 %v952
        %977 = vmatpush.msra.mxu0 %v951
        %978 = vmatpush.msra.mxu0 %v950
        %979 = vmatpush.msra.mxu0 %v949
        %980 = vmatpush.msra.mxu0 %v948
        %981 = vmatmul.f32.gmra.mxu0 %v946
        %v982 = vpop.f32.mrf.mxu0
        %v983 = vadd.f32 %v964, %v982
        %984 = vmatmul.f32.gmra.mxu0 %v947
        %v985 = vpop.f32.mrf.mxu0
        %v986 = vadd.f32 %v964, %v985
        %987 = vdwg.mxu0
        %v988 = vmax.f32 %v983, 0.0
        %v989 = vmax.f32 %v986, 0.0
        %v990 = vld [vmem:[%s238 + $0x280] sm:$0xff]
        %v991 = vld [vmem:[%s238 + $0x288] sm:$0xff]
        %v992 = vld [vmem:[%s238 + $0x290] sm:$0xff]
        %v993 = vld [vmem:[%s238 + $0x298] sm:$0xff]
        %v994 = vld [vmem:[%s238 + $0x2a0] sm:$0xff]
        %v995 = vld [vmem:[%s238 + $0x2a8] sm:$0xff]
        %v996 = vld [vmem:[%s238 + $0x2b0] sm:$0xff]
        %v997 = vld [vmem:[%s238 + $0x2b8] sm:$0xff]
        %v998 = vld [vmem:[%s238 + $0x2c0] sm:$0xff]
        %v999 = vld [vmem:[%s238 + $0x2c8] sm:$0xff]
        %v1000 = vld [vmem:[%s238 + $0x2d0] sm:$0xff]
        %v1001 = vld [vmem:[%s238 + $0x2d8] sm:$0xff]
        %v1002 = vld [vmem:[%s238 + $0x2e0] sm:$0xff]
        %v1003 = vld [vmem:[%s238 + $0x2e8] sm:$0xff]
        %v1004 = vld [vmem:[%s238 + $0x2f0] sm:$0xff]
        %v1005 = vld [vmem:[%s238 + $0x2f8] sm:$0xff]
        %v1006 = vperm.slane %v373, 5
        %1007 = vmatpush.msra.mxu0 %v1005
        %1008 = vmatpush.msra.mxu0 %v1004
        %1009 = vmatpush.msra.mxu0 %v1003
        %1010 = vmatpush.msra.mxu0 %v1002
        %1011 = vmatpush.msra.mxu0 %v1001
        %1012 = vmatpush.msra.mxu0 %v1000
        %1013 = vmatpush.msra.mxu0 %v999
        %1014 = vmatpush.msra.mxu0 %v998
        %1015 = vmatpush.msra.mxu0 %v997
        %1016 = vmatpush.msra.mxu0 %v996
        %1017 = vmatpush.msra.mxu0 %v995
        %1018 = vmatpush.msra.mxu0 %v994
        %1019 = vmatpush.msra.mxu0 %v993
        %1020 = vmatpush.msra.mxu0 %v992
        %1021 = vmatpush.msra.mxu0 %v991
        %1022 = vmatpush.msra.mxu0 %v990
        %1023 = vmatmul.f32.gmra.mxu0 %v988
        %v1024 = vpop.f32.mrf.mxu0
        %v1025 = vadd.f32 %v1006, %v1024
        %1026 = vmatmul.f32.gmra.mxu0 %v989
        %v1027 = vpop.f32.mrf.mxu0
        %v1028 = vadd.f32 %v1006, %v1027
        %1029 = vdwg.mxu0
        %v1030 = vadd.f32 %v946, %v1025
        %v1031 = vadd.f32 %v947, %v1028
        %1032 = vmatpush.msra.mxu0 %v867
        %1033 = vmatpush.msra.mxu0 %v866
        %1034 = vmatpush.msra.mxu0 %v865
        %1035 = vmatpush.msra.mxu0 %v864
        %1036 = vmatpush.msra.mxu0 %v863
        %1037 = vmatpush.msra.mxu0 %v862
        %1038 = vmatpush.msra.mxu0 %v861
        %1039 = vmatpush.msra.mxu0 %v860
        %1040 = vmatpush.msra.mxu0 %v859
        %1041 = vmatpush.msra.mxu0 %v858
        %1042 = vmatpush.msra.mxu0 %v857
        %1043 = vmatpush.msra.mxu0 %v856
        %1044 = vmatpush.msra.mxu0 %v855
        %1045 = vmatpush.msra.mxu0 %v854
        %1046 = vmatpush.msra.mxu0 %v853
        %1047 = vmatpush.msra.mxu0 %v852
        %1048 = vmatmul.f32.gmra.mxu0 %v1030
        %v1049 = vpop.f32.mrf.mxu0
        %v1050 = vadd.f32 0.0, %v1049
        %1051 = vmatmul.f32.gmra.mxu0 %v1031
        %v1052 = vpop.f32.mrf.mxu0
        %v1053 = vadd.f32 0.0, %v1052
        %1054 = vdwg.mxu0
        %v1055 = vsub.f32 %v1030, %v1050
        %v1056 = vsub.f32 %v1031, %v1053
        %v1057 = vmul.f32 %v1055, %v1055
        %v1058 = vmul.f32 %v1056, %v1056
        %1059 = vmatpush.msra.mxu0 %v867
        %1060 = vmatpush.msra.mxu0 %v866
        %1061 = vmatpush.msra.mxu0 %v865
        %1062 = vmatpush.msra.mxu0 %v864
        %1063 = vmatpush.msra.mxu0 %v863
        %1064 = vmatpush.msra.mxu0 %v862
        %1065 = vmatpush.msra.mxu0 %v861
        %1066 = vmatpush.msra.mxu0 %v860
        %1067 = vmatpush.msra.mxu0 %v859
        %1068 = vmatpush.msra.mxu0 %v858
        %1069 = vmatpush.msra.mxu0 %v857
        %1070 = vmatpush.msra.mxu0 %v856
        %1071 = vmatpush.msra.mxu0 %v855
        %1072 = vmatpush.msra.mxu0 %v854
        %1073 = vmatpush.msra.mxu0 %v853
        %1074 = vmatpush.msra.mxu0 %v852
        %1075 = vmatmul.f32.gmra.mxu0 %v1057
        %v1076 = vpop.f32.mrf.mxu0
        %v1077 = vadd.f32 1e-05, %v1076
        %1078 = vmatmul.f32.gmra.mxu0 %v1058
        %v1079 = vpop.f32.mrf.mxu0
        %v1080 = vadd.f32 1e-05, %v1079
        %1081 = vdwg.mxu0
        %v1082 = vrsqrt.pop %v1077
        %v1083 = vmul.f32 %v1082, %v1077
        %v1084 = vmul.f32 %v1083, %v1082
        %v1085 = vmul.f32 0.5, %v1084
        %v1086 = vsub.f32 1.5, %v1085
        %v1087 = vmul.f32 %v1082, %v1086
        %vm1088 = vweird.f32 %v1077
        %vm1089 = vweird.f32 %v1082
        %vm1090 = vmor %vm1088, %vm1089
        %v1091 = vsel %vm1090, %v1082, %v1087
        %v1092 = vrsqrt.pop %v1080
        %v1093 = vmul.f32 %v1092, %v1080
        %v1094 = vmul.f32 %v1093, %v1092
        %v1095 = vmul.f32 0.5, %v1094
        %v1096 = vsub.f32 1.5, %v1095
        %v1097 = vmul.f32 %v1092, %v1096
        %vm1098 = vweird.f32 %v1080
        %vm1099 = vweird.f32 %v1092
        %vm1100 = vmor %vm1098, %vm1099
        %v1101 = vsel %vm1100, %v1092, %v1097
        %v1102 = vmul.f32 %v1055, %v1091
        %v1103 = vmul.f32 %v1056, %v1101
        %v1104 = vperm.slane %v374, 0
        %v1105 = vmul.f32 %v1102, %v1104
        %v1106 = vmul.f32 %v1103, %v1104
        %v1107 = vperm.slane %v374, 1
        %v1108 = vadd.f32 %v1105, %v1107
        %v1109 = vadd.f32 %v1106, %v1107
        %v1110 = vld [vmem:[%s238 + $0x300] sm:$0xff]
        %v1111 = vld [vmem:[%s238 + $0x308] sm:$0xff]
        %v1112 = vld [vmem:[%s238 + $0x310] sm:$0xff]
        %v1113 = vld [vmem:[%s238 + $0x318] sm:$0xff]
        %v1114 = vld [vmem:[%s238 + $0x320] sm:$0xff]
        %v1115 = vld [vmem:[%s238 + $0x328] sm:$0xff]
        %v1116 = vld [vmem:[%s238 + $0x330] sm:$0xff]
        %v1117 = vld [vmem:[%s238 + $0x338] sm:$0xff]
        %v1118 = vld [vmem:[%s238 + $0x340] sm:$0xff]
        %v1119 = vld [vmem:[%s238 + $0x348] sm:$0xff]
        %v1120 = vld [vmem:[%s238 + $0x350] sm:$0xff]
        %v1121 = vld [vmem:[%s238 + $0x358] sm:$0xff]
        %v1122 = vld [vmem:[%s238 + $0x360] sm:$0xff]
        %v1123 = vld [vmem:[%s238 + $0x368] sm:$0xff]
        %v1124 = vld [vmem:[%s238 + $0x370] sm:$0xff]
        %v1125 = vld [vmem:[%s238 + $0x378] sm:$0xff]
        %1126 = vmatpush.msra.mxu0 %v1125
        %1127 = vmatpush.msra.mxu0 %v1124
        %1128 = vmatpush.msra.mxu0 %v1123
        %1129 = vmatpush.msra.mxu0 %v1122
        %1130 = vmatpush.msra.mxu0 %v1121
        %1131 = vmatpush.msra.mxu0 %v1120
        %1132 = vmatpush.msra.mxu0 %v1119
        %1133 = vmatpush.msra.mxu0 %v1118
        %1134 = vmatpush.msra.mxu0 %v1117
        %1135 = vmatpush.msra.mxu0 %v1116
        %1136 = vmatpush.msra.mxu0 %v1115
        %1137 = vmatpush.msra.mxu0 %v1114
        %1138 = vmatpush.msra.mxu0 %v1113
        %1139 = vmatpush.msra.mxu0 %v1112
        %1140 = vmatpush.msra.mxu0 %v1111
        %1141 = vmatpush.msra.mxu0 %v1110
        %1142 = vmatmul.f32.gmra.mxu0 %v1108
        %v1143 = vpop.f32.mrf.mxu0
        %v1144 = vadd.f32 0.0, %v1143
        %1145 = vmatmul.f32.gmra.mxu0 %v1109
        %v1146 = vpop.f32.mrf.mxu0
        %v1147 = vadd.f32 0.0, %v1146
        %1148 = vdwg.mxu0
        %1149 = vst [vmem:[%s301] sm:$0xff] %v1144
        %1150 = vst [vmem:[%s301 + $0x8] sm:$0xff] %v1147
        %s1151 = smul.u32 2, %s21
        %p1152 = scmp.lt.s32.totalorder %s1151, 9
        %s1153 = scalar_select %p1152, %s1151, 9
        %s1154 = smul.addr %s1153, 8
        %s1155 = scalar_lea.vmem %s4, %s1154
        // Predicated region
        $region49: #{transformer_encoders2_forward.1} parent=35 // pred_check
          %p1156 = pneg %p138
        $region50: #{transformer_encoders2_forward.1} parent=35 // pred_check_branch
          %1158 = sbr.rel (%p1156) target = $region52
        $region51: #{transformer_encoders2_forward.1} parent=35 // pred_region
          %s1159 = smul.u32 2, %s21
        $region52: #{transformer_encoders2_forward.1} parent=35 // pred_fallthru
          _
      $region36: #{transformer_encoders2_forward.1} parent=5 // pred_fallthru
        _
      %p1160 = scmp.le.s32.totalorder 2, %s16
      // Predicated region
      $region53: #{transformer_encoders2_forward.1} parent=5 // pred_check
        %p1161 = pneg %p1160
      $region54: #{transformer_encoders2_forward.1} parent=5 // pred_check_branch
        %1163 = sbr.rel (%p1161) target = $region56
      $region55: #{transformer_encoders2_forward.1} parent=5 // pred_region
        %s1164 = ssub.s32 %s16, 2
        // Predicated region
        $region57: #{transformer_encoders2_forward.1} parent=55 // pred_check
          %p1165 = pneg %p144
        $region58: #{transformer_encoders2_forward.1} parent=55 // pred_check_branch
          %1167 = sbr.rel (%p1165) target = $region60
        $region59: #{transformer_encoders2_forward.1} parent=55 // pred_region
          %s1168 = smul.u32 2, %s22
          %p1169 = scmp.lt.s32.totalorder %s1168, 9
          %s1170 = scalar_select %p1169, %s1168, 9
          %s1171 = smul.addr %s1170, 8
          %s1172 = scalar_lea.vmem %s4, %s1171
        $region60: #{transformer_encoders2_forward.1} parent=55 // pred_fallthru
          _
      $region56: #{transformer_encoders2_forward.1} parent=5 // pred_fallthru
        _
    $region6: #{transformer_encoders2_forward.1} parent=1 // loop_footer
      %s20 = sadd.s32 1, %s16
    $region7: #{transformer_encoders2_forward.1} parent=1 // loop_footer_branch
      %15 = sbr.rel target = $region3
    $region8: #{transformer_encoders2_forward.1} parent=1 // loop_exit
      _
    %1173 = vsyncpa [#allocation3], 1
    %s1174 = scalar_lea.sflag [#allocation3], 1
    %1175 = vsyncpa %s1174, 1
    %1176 = vsyncpa [#allocation5], 1
    %s1177 = scalar_lea.sflag [#allocation5], 1
    %1178 = vsyncpa %s1177, 1

</llo_original>
